<compile_context>
chip_gen: v7x
topology: tpu7x:2x2x1
jax: 0.10.0
libtpu: 0.0.40
codegen_flags: <defaults>
</compile_context>

<pallas_src>
import functools

import jax
import jax.numpy as jnp
from jax.experimental import pallas as pl
from jax.experimental.pallas import tpu as pltpu


def _downsample_conv_kernel(x_ref, w_ref, b_ref, o_ref,
                            ee_ref, eo_ref, oe_ref, oo_ref, *, row_chunk):
    """3x3 / stride-2 / pad-1 conv for one batch element (NHWC, channels on lanes).

    x_ref : (H, W, Cin)        unpadded input
    w_ref : (9*Cin, Cout)      HWIO weights in (kh, kw, cin)-major im2col order
    b_ref : (1, Cout)          bias
    o_ref : (OH, OW, Cout)     output
    Phase planes of the zero-padded input P (P[p, q] = x[p-1, q-1], zero on the border):
        ee_ref = P[0::2, 0::2] -> (OH+1, OW+1, Cin)
        eo_ref = P[0::2, 1::2] -> (OH+1, OW,   Cin)
        oe_ref = P[1::2, 0::2] -> (OH,   OW+1, Cin)
        oo_ref = P[1::2, 1::2] -> (OH,   OW,   Cin)   (== x[0::2, 0::2], no padding)
    """
    h, w, cin = x_ref.shape
    oh, ow, cout = o_ref.shape
    n_odd_rows = h // 2          # valid odd input rows (1, 3, ...)
    n_odd_cols = w // 2          # valid odd input cols
    dt = x_ref.dtype

    # ---- zero the phase-plane borders once; interior writes never touch them ----
    @pl.when(pl.program_id(0) == 0)
    def _init_borders():
        ee_ref[0:1, :, :] = jnp.zeros((1, ow + 1, cin), dt)       # padded top row
        eo_ref[0:1, :, :] = jnp.zeros((1, ow, cin), dt)
        ee_ref[:, 0:1, :] = jnp.zeros((oh + 1, 1, cin), dt)       # padded left col
        oe_ref[:, 0:1, :] = jnp.zeros((oh, 1, cin), dt)
        if h % 2 == 1:                                            # padded bottom row
            ee_ref[oh:oh + 1, :, :] = jnp.zeros((1, ow + 1, cin), dt)
            eo_ref[oh:oh + 1, :, :] = jnp.zeros((1, ow, cin), dt)
        if w % 2 == 1:                                            # padded right col
            ee_ref[:, ow:ow + 1, :] = jnp.zeros((oh + 1, 1, cin), dt)
            oe_ref[:, ow:ow + 1, :] = jnp.zeros((oh, 1, cin), dt)

    # ---- polyphase extraction: one strided pass over the image (4 phases total) ----
    oo_ref[:, :, :] = x_ref[pl.ds(0, oh, stride=2), pl.ds(0, ow, stride=2), :]
    if n_odd_cols > 0:
        oe_ref[:, 1:1 + n_odd_cols, :] = (
            x_ref[pl.ds(0, oh, stride=2), pl.ds(1, n_odd_cols, stride=2), :])
    if n_odd_rows > 0:
        eo_ref[1:1 + n_odd_rows, :, :] = (
            x_ref[pl.ds(1, n_odd_rows, stride=2), pl.ds(0, ow, stride=2), :])
        if n_odd_cols > 0:
            ee_ref[1:1 + n_odd_rows, 1:1 + n_odd_cols, :] = (
                x_ref[pl.ds(1, n_odd_rows, stride=2), pl.ds(1, n_odd_cols, stride=2), :])

    # Tap t = kh*3 + kw  ->  (phase plane, row offset, col offset); all slices contiguous.
    taps = (
        (ee_ref, 0, 0), (eo_ref, 0, 0), (ee_ref, 0, 1),   # kh = 0
        (oe_ref, 0, 0), (oo_ref, 0, 0), (oe_ref, 0, 1),   # kh = 1
        (ee_ref, 1, 0), (eo_ref, 1, 0), (ee_ref, 1, 1),   # kh = 2
    )

    w_all = w_ref[...]                                   # (9*Cin, Cout), loaded once
    bias = b_ref[...].astype(jnp.float32)                # (1, Cout)

    # ---- per-tap MXU accumulation, chunked over output rows (constant M per chunk) ----
    for r0 in range(0, oh, row_chunk):
        tr = min(row_chunk, oh - r0)
        m = tr * ow
        acc = None
        for t, (ph_ref, roff, coff) in enumerate(taps):
            plane = ph_ref[r0 + roff:r0 + roff + tr, coff:coff + ow, :]   # (tr, OW, Cin)
            part = jnp.dot(plane.reshape(m, cin),
                           w_all[t * cin:(t + 1) * cin, :],
                           preferred_element_type=jnp.float32)
            acc = part if acc is None else acc + part
        out = (acc + bias).reshape(tr, ow, cout).astype(o_ref.dtype)
        o_ref[r0:r0 + tr, :, :] = out


def _pick_row_chunk(oh, ow, target_m=1024):
    """Largest divisor of OH with tr*OW <= target_m, preferring tr*OW % 8 == 0."""
    divisors = [d for d in range(1, oh + 1) if oh % d == 0]
    within = [d for d in divisors if d * ow <= target_m] or [1]
    aligned = [d for d in within if (d * ow) % 8 == 0]
    return max(aligned) if aligned else max(within)


def _vmem_limit_bytes():
    """Scoped-VMEM limit sized from the chip with ~25% headroom (48 MiB fallback)."""
    cap = 64 * 1024 * 1024
    try:
        info = pltpu.get_tpu_info()
        cap = int(getattr(info, "vmem_capacity_bytes", cap))
    except Exception:
        pass
    return cap * 3 // 4


@jax.jit
def downsample_conv(x_nchw, w_hwio, bias):
    """Equivalent of Downsample(channels, use_conv=True).forward(x), x in NCHW."""
    n, c, h, w = x_nchw.shape
    cout = w_hwio.shape[-1]
    oh = (h - 1) // 2 + 1          # == (h + 2*1 - 3)//2 + 1
    ow = (w - 1) // 2 + 1

    # NCHW -> NHWC (channels on the lane axis); dtype preserved (no blanket f32 upcast).
    x_nhwc = jnp.transpose(x_nchw, (0, 2, 3, 1))
    # (3, 3, Cin, Cout) -> (9*Cin, Cout): (kh, kw, cin)-major rows to match the tap order.
    w2d = w_hwio.reshape(9 * c, cout)
    b2d = bias.reshape(1, cout)

    row_chunk = _pick_row_chunk(oh, ow)
    kernel = functools.partial(_downsample_conv_kernel, row_chunk=row_chunk)

    itemsize = jnp.dtype(x_nhwc.dtype).itemsize
    cost = pl.CostEstimate(
        flops=2 * n * oh * ow * 9 * c * cout,
        transcendentals=0,
        bytes_accessed=(n * h * w * c + 9 * c * cout + cout
                        + n * oh * ow * cout) * itemsize,
    )

    out_nhwc = pl.pallas_call(
        kernel,
        out_shape=jax.ShapeDtypeStruct((n, oh, ow, cout), x_nhwc.dtype),
        grid_spec=pltpu.PrefetchScalarGridSpec(
            num_scalar_prefetch=0,
            grid=(n,),
            in_specs=[
                pl.BlockSpec((None, h, w, c), lambda i: (i, 0, 0, 0)),
                pl.BlockSpec((9 * c, cout), lambda i: (0, 0)),
                pl.BlockSpec((1, cout), lambda i: (0, 0)),
            ],
            out_specs=pl.BlockSpec((None, oh, ow, cout), lambda i: (i, 0, 0, 0)),
            scratch_shapes=[
                pltpu.VMEM((oh + 1, ow + 1, c), x_nhwc.dtype),   # even-row / even-col phase
                pltpu.VMEM((oh + 1, ow, c), x_nhwc.dtype),       # even-row / odd-col phase
                pltpu.VMEM((oh, ow + 1, c), x_nhwc.dtype),       # odd-row  / even-col phase
                pltpu.VMEM((oh, ow, c), x_nhwc.dtype),           # odd-row  / odd-col phase
            ],
        ),
        compiler_params=pltpu.CompilerParams(
            dimension_semantics=("parallel",),
            vmem_limit_bytes=_vmem_limit_bytes(),
        ),
        cost_estimate=cost,
    )(x_nhwc, w2d, b2d)

    # NHWC -> NCHW to match the PyTorch output convention.
    return jnp.transpose(out_nhwc, (0, 3, 1, 2))


if __name__ == "__main__":
    key = jax.random.PRNGKey(0)
    kx, kw, kb = jax.random.split(key, 3)

    N, C, H, W = 2, 4, 16, 16
    x = jax.random.normal(kx, (N, C, H, W), dtype=jnp.float32)

    # Conv2d(C, C, 3) params, deterministic init (PyTorch-style uniform +/- 1/sqrt(fan_in)).
    fan_in = C * 3 * 3
    bound = 1.0 / (fan_in ** 0.5)
    w_hwio = jax.random.uniform(kw, (3, 3, C, C), jnp.float32, -bound, bound)
    bias = jax.random.uniform(kb, (C,), jnp.float32, -bound, bound)

    out = jax.block_until_ready(downsample_conv(x, w_hwio, bias))
    assert out.shape == (N, C, H // 2, W // 2), out.shape

    # Cross-check against XLA's conv (same semantics as torch Conv2d stride=2 pad=1).
    ref = jax.lax.conv_general_dilated(
        jnp.transpose(x, (0, 2, 3, 1)),
        w_hwio,
        window_strides=(2, 2),
        padding=((1, 1), (1, 1)),
        dimension_numbers=("NHWC", "HWIO", "NHWC"),
    ) + bias
    ref = jnp.transpose(ref, (0, 3, 1, 2))
    # Loose tolerance: the Pallas MXU matmuls and XLA's conv may round differently under the
    # default TPU matmul precision; differences are O(1e-3) at these magnitudes.
    assert jnp.allclose(out, ref, atol=1e-2, rtol=1e-2), float(jnp.max(jnp.abs(out - ref)))

    print("KERNEL_OK")
</pallas_src>

<mosaic_0001>
module attributes {stable_mosaic.version = 11 : i64} {
  func.func @_downsample_conv_kernel(%arg0: i32, %arg1: memref<1x16x16x4xf32, #tpu.memory_space<vmem>>, %arg2: memref<36x4xf32, #tpu.memory_space<vmem>>, %arg3: memref<1x4xf32, #tpu.memory_space<vmem>>, %arg4: memref<1x8x8x4xf32, #tpu.memory_space<vmem>>, %arg5: memref<9x9x4xf32, #tpu.memory_space<vmem>>, %arg6: memref<9x8x4xf32, #tpu.memory_space<vmem>>, %arg7: memref<8x9x4xf32, #tpu.memory_space<vmem>>, %arg8: memref<8x8x4xf32, #tpu.memory_space<vmem>>) attributes {dimension_semantics = [#tpu.dimension_semantics<parallel>], iteration_bounds = array<i64: 2>, scalar_prefetch = 0 : i64, scratch_operands = 4 : i64, tpu.core_type = #tpu.core_type<tc>, window_params = [{transform_indices = @transform_0, window_bounds = array<i64: 1, 16, 16, 4>}, {pipeline_mode = #tpu.pipeline_mode<synchronous>, transform_indices = @transform_1, window_bounds = array<i64: 36, 4>}, {pipeline_mode = #tpu.pipeline_mode<synchronous>, transform_indices = @transform_2, window_bounds = array<i64: 1, 4>}, {transform_indices = @transform_3, window_bounds = array<i64: 1, 8, 8, 4>}]} {
    %c0_i32 = arith.constant 0 : i32
    %0 = arith.cmpi eq, %arg0, %c0_i32 : i32
    %1 = arith.extui %0 : i1 to i32
    %c0_i32_0 = arith.constant 0 : i32
    %2 = arith.cmpi ne, %1, %c0_i32_0 : i32
    scf.if %2 {
      %cst_70 = arith.constant 0.000000e+00 : f32
      %67 = vector.broadcast %cst_70 : f32 to vector<1x9x4xf32>
      %c0_71 = arith.constant 0 : index
      %c0_72 = arith.constant 0 : index
      %c0_73 = arith.constant 0 : index
      %68 = vector.load %arg5[%c0_71, %c0_72, %c0_73] : memref<9x9x4xf32, #tpu.memory_space<vmem>>, vector<1x9x4xf32>
      tpu.vector_store %arg5[%c0_71, %c0_72, %c0_73], %67 {strides = array<i32>} : memref<9x9x4xf32, #tpu.memory_space<vmem>>, vector<1x9x4xf32>,
      %cst_74 = arith.constant 0.000000e+00 : f32
      %69 = vector.broadcast %cst_74 : f32 to vector<1x8x4xf32>
      %c0_75 = arith.constant 0 : index
      %c0_76 = arith.constant 0 : index
      %c0_77 = arith.constant 0 : index
      %70 = vector.load %arg6[%c0_75, %c0_76, %c0_77] : memref<9x8x4xf32, #tpu.memory_space<vmem>>, vector<1x8x4xf32>
      tpu.vector_store %arg6[%c0_75, %c0_76, %c0_77], %69 {strides = array<i32>} : memref<9x8x4xf32, #tpu.memory_space<vmem>>, vector<1x8x4xf32>,
      %cst_78 = arith.constant 0.000000e+00 : f32
      %71 = vector.broadcast %cst_78 : f32 to vector<9x1x4xf32>
      %c0_79 = arith.constant 0 : index
      %c0_80 = arith.constant 0 : index
      %c0_81 = arith.constant 0 : index
      %72 = vector.load %arg5[%c0_79, %c0_80, %c0_81] : memref<9x9x4xf32, #tpu.memory_space<vmem>>, vector<9x1x4xf32>
      tpu.vector_store %arg5[%c0_79, %c0_80, %c0_81], %71 {strides = array<i32>} : memref<9x9x4xf32, #tpu.memory_space<vmem>>, vector<9x1x4xf32>,
      %cst_82 = arith.constant 0.000000e+00 : f32
      %73 = vector.broadcast %cst_82 : f32 to vector<8x1x4xf32>
      %c0_83 = arith.constant 0 : index
      %c0_84 = arith.constant 0 : index
      %c0_85 = arith.constant 0 : index
      %74 = vector.load %arg7[%c0_83, %c0_84, %c0_85] : memref<8x9x4xf32, #tpu.memory_space<vmem>>, vector<8x1x4xf32>
      tpu.vector_store %arg7[%c0_83, %c0_84, %c0_85], %73 {strides = array<i32>} : memref<8x9x4xf32, #tpu.memory_space<vmem>>, vector<8x1x4xf32>,
    } else {
    }
    %c0 = arith.constant 0 : index
    %c0_1 = arith.constant 0 : index
    %c0_2 = arith.constant 0 : index
    %c0_3 = arith.constant 0 : index
    %3 = tpu.strided_load %arg1[%c0, %c0_1, %c0_2, %c0_3] {strides = array<i32: 1, 2, 2, 1>} : memref<1x16x16x4xf32, #tpu.memory_space<vmem>>, vector<1x8x8x4xf32>
    %4 = vector.shape_cast %3 : vector<1x8x8x4xf32> to vector<8x8x4xf32>
    %c0_4 = arith.constant 0 : index
    %c0_5 = arith.constant 0 : index
    %c0_6 = arith.constant 0 : index
    %5 = vector.load %arg8[%c0_4, %c0_5, %c0_6] : memref<8x8x4xf32, #tpu.memory_space<vmem>>, vector<8x8x4xf32>
    tpu.vector_store %arg8[%c0_4, %c0_5, %c0_6], %4 {strides = array<i32>} : memref<8x8x4xf32, #tpu.memory_space<vmem>>, vector<8x8x4xf32>,
    %c0_7 = arith.constant 0 : index
    %c0_8 = arith.constant 0 : index
    %c1 = arith.constant 1 : index
    %c0_9 = arith.constant 0 : index
    %6 = tpu.strided_load %arg1[%c0_7, %c0_8, %c1, %c0_9] {strides = array<i32: 1, 2, 2, 1>} : memref<1x16x16x4xf32, #tpu.memory_space<vmem>>, vector<1x8x8x4xf32>
    %7 = vector.shape_cast %6 : vector<1x8x8x4xf32> to vector<8x8x4xf32>
    %c0_10 = arith.constant 0 : index
    %c1_11 = arith.constant 1 : index
    %c0_12 = arith.constant 0 : index
    %8 = vector.load %arg7[%c0_10, %c1_11, %c0_12] : memref<8x9x4xf32, #tpu.memory_space<vmem>>, vector<8x8x4xf32>
    tpu.vector_store %arg7[%c0_10, %c1_11, %c0_12], %7 {strides = array<i32>} : memref<8x9x4xf32, #tpu.memory_space<vmem>>, vector<8x8x4xf32>,
    %c0_13 = arith.constant 0 : index
    %c1_14 = arith.constant 1 : index
    %c0_15 = arith.constant 0 : index
    %c0_16 = arith.constant 0 : index
    %9 = tpu.strided_load %arg1[%c0_13, %c1_14, %c0_15, %c0_16] {strides = array<i32: 1, 2, 2, 1>} : memref<1x16x16x4xf32, #tpu.memory_space<vmem>>, vector<1x8x8x4xf32>
    %10 = vector.shape_cast %9 : vector<1x8x8x4xf32> to vector<8x8x4xf32>
    %c1_17 = arith.constant 1 : index
    %c0_18 = arith.constant 0 : index
    %c0_19 = arith.constant 0 : index
    %11 = vector.load %arg6[%c1_17, %c0_18, %c0_19] : memref<9x8x4xf32, #tpu.memory_space<vmem>>, vector<8x8x4xf32>
    tpu.vector_store %arg6[%c1_17, %c0_18, %c0_19], %10 {strides = array<i32>} : memref<9x8x4xf32, #tpu.memory_space<vmem>>, vector<8x8x4xf32>,
    %c0_20 = arith.constant 0 : index
    %c1_21 = arith.constant 1 : index
    %c1_22 = arith.constant 1 : index
    %c0_23 = arith.constant 0 : index
    %12 = tpu.strided_load %arg1[%c0_20, %c1_21, %c1_22, %c0_23] {strides = array<i32: 1, 2, 2, 1>} : memref<1x16x16x4xf32, #tpu.memory_space<vmem>>, vector<1x8x8x4xf32>
    %13 = vector.shape_cast %12 : vector<1x8x8x4xf32> to vector<8x8x4xf32>
    %c1_24 = arith.constant 1 : index
    %c1_25 = arith.constant 1 : index
    %c0_26 = arith.constant 0 : index
    %14 = vector.load %arg5[%c1_24, %c1_25, %c0_26] : memref<9x9x4xf32, #tpu.memory_space<vmem>>, vector<8x8x4xf32>
    tpu.vector_store %arg5[%c1_24, %c1_25, %c0_26], %13 {strides = array<i32>} : memref<9x9x4xf32, #tpu.memory_space<vmem>>, vector<8x8x4xf32>,
    %c0_27 = arith.constant 0 : index
    %c0_28 = arith.constant 0 : index
    %15 = vector.load %arg2[%c0_27, %c0_28] : memref<36x4xf32, #tpu.memory_space<vmem>>, vector<36x4xf32>
    %c0_29 = arith.constant 0 : index
    %c0_30 = arith.constant 0 : index
    %16 = vector.load %arg3[%c0_29, %c0_30] : memref<1x4xf32, #tpu.memory_space<vmem>>, vector<1x4xf32>
    %c0_31 = arith.constant 0 : index
    %c0_32 = arith.constant 0 : index
    %c0_33 = arith.constant 0 : index
    %17 = vector.load %arg5[%c0_31, %c0_32, %c0_33] : memref<9x9x4xf32, #tpu.memory_space<vmem>>, vector<8x8x4xf32>
    %18 = vector.shape_cast %17 : vector<8x8x4xf32> to vector<64x4xf32>
    %19 = vector.extract_strided_slice %15 {offsets = [0, 0], sizes = [4, 4], strides = [1, 1]} : vector<36x4xf32> to vector<4x4xf32>
    %cst = arith.constant dense<0.000000e+00> : vector<64x4xf32>
    %20 = tpu.matmul %18, %19, %cst {dimension_numbers = #tpu.dot_dimension_numbers<[1], [0], [0], [1], [0, 0, 1, 1], [], []>} : vector<64x4xf32>, vector<4x4xf32>, vector<64x4xf32> -> vector<64x4xf32>
    %c0_34 = arith.constant 0 : index
    %c0_35 = arith.constant 0 : index
    %c0_36 = arith.constant 0 : index
    %21 = vector.load %arg6[%c0_34, %c0_35, %c0_36] : memref<9x8x4xf32, #tpu.memory_space<vmem>>, vector<8x8x4xf32>
    %22 = vector.shape_cast %21 : vector<8x8x4xf32> to vector<64x4xf32>
    %23 = vector.extract_strided_slice %15 {offsets = [4, 0], sizes = [4, 4], strides = [1, 1]} : vector<36x4xf32> to vector<4x4xf32>
    %cst_37 = arith.constant dense<0.000000e+00> : vector<64x4xf32>
    %24 = tpu.matmul %22, %23, %cst_37 {dimension_numbers = #tpu.dot_dimension_numbers<[1], [0], [0], [1], [0, 0, 1, 1], [], []>} : vector<64x4xf32>, vector<4x4xf32>, vector<64x4xf32> -> vector<64x4xf32>
    %25 = arith.addf %20, %24 : vector<64x4xf32>
    %c0_38 = arith.constant 0 : index
    %c1_39 = arith.constant 1 : index
    %c0_40 = arith.constant 0 : index
    %26 = vector.load %arg5[%c0_38, %c1_39, %c0_40] : memref<9x9x4xf32, #tpu.memory_space<vmem>>, vector<8x8x4xf32>
    %27 = vector.shape_cast %26 : vector<8x8x4xf32> to vector<64x4xf32>
    %28 = vector.extract_strided_slice %15 {offsets = [8, 0], sizes = [4, 4], strides = [1, 1]} : vector<36x4xf32> to vector<4x4xf32>
    %cst_41 = arith.constant dense<0.000000e+00> : vector<64x4xf32>
    %29 = tpu.matmul %27, %28, %cst_41 {dimension_numbers = #tpu.dot_dimension_numbers<[1], [0], [0], [1], [0, 0, 1, 1], [], []>} : vector<64x4xf32>, vector<4x4xf32>, vector<64x4xf32> -> vector<64x4xf32>
    %30 = arith.addf %25, %29 : vector<64x4xf32>
    %c0_42 = arith.constant 0 : index
    %c0_43 = arith.constant 0 : index
    %c0_44 = arith.constant 0 : index
    %31 = vector.load %arg7[%c0_42, %c0_43, %c0_44] : memref<8x9x4xf32, #tpu.memory_space<vmem>>, vector<8x8x4xf32>
    %32 = vector.shape_cast %31 : vector<8x8x4xf32> to vector<64x4xf32>
    %33 = vector.extract_strided_slice %15 {offsets = [12, 0], sizes = [4, 4], strides = [1, 1]} : vector<36x4xf32> to vector<4x4xf32>
    %cst_45 = arith.constant dense<0.000000e+00> : vector<64x4xf32>
    %34 = tpu.matmul %32, %33, %cst_45 {dimension_numbers = #tpu.dot_dimension_numbers<[1], [0], [0], [1], [0, 0, 1, 1], [], []>} : vector<64x4xf32>, vector<4x4xf32>, vector<64x4xf32> -> vector<64x4xf32>
    %35 = arith.addf %30, %34 : vector<64x4xf32>
    %c0_46 = arith.constant 0 : index
    %c0_47 = arith.constant 0 : index
    %c0_48 = arith.constant 0 : index
    %36 = vector.load %arg8[%c0_46, %c0_47, %c0_48] : memref<8x8x4xf32, #tpu.memory_space<vmem>>, vector<8x8x4xf32>
    %37 = vector.shape_cast %36 : vector<8x8x4xf32> to vector<64x4xf32>
    %38 = vector.extract_strided_slice %15 {offsets = [16, 0], sizes = [4, 4], strides = [1, 1]} : vector<36x4xf32> to vector<4x4xf32>
    %cst_49 = arith.constant dense<0.000000e+00> : vector<64x4xf32>
    %39 = tpu.matmul %37, %38, %cst_49 {dimension_numbers = #tpu.dot_dimension_numbers<[1], [0], [0], [1], [0, 0, 1, 1], [], []>} : vector<64x4xf32>, vector<4x4xf32>, vector<64x4xf32> -> vector<64x4xf32>
    %40 = arith.addf %35, %39 : vector<64x4xf32>
    %c0_50 = arith.constant 0 : index
    %c1_51 = arith.constant 1 : index
    %c0_52 = arith.constant 0 : index
    %41 = vector.load %arg7[%c0_50, %c1_51, %c0_52] : memref<8x9x4xf32, #tpu.memory_space<vmem>>, vector<8x8x4xf32>
    %42 = vector.shape_cast %41 : vector<8x8x4xf32> to vector<64x4xf32>
    %43 = vector.extract_strided_slice %15 {offsets = [20, 0], sizes = [4, 4], strides = [1, 1]} : vector<36x4xf32> to vector<4x4xf32>
    %cst_53 = arith.constant dense<0.000000e+00> : vector<64x4xf32>
    %44 = tpu.matmul %42, %43, %cst_53 {dimension_numbers = #tpu.dot_dimension_numbers<[1], [0], [0], [1], [0, 0, 1, 1], [], []>} : vector<64x4xf32>, vector<4x4xf32>, vector<64x4xf32> -> vector<64x4xf32>
    %45 = arith.addf %40, %44 : vector<64x4xf32>
    %c1_54 = arith.constant 1 : index
    %c0_55 = arith.constant 0 : index
    %c0_56 = arith.constant 0 : index
    %46 = vector.load %arg5[%c1_54, %c0_55, %c0_56] : memref<9x9x4xf32, #tpu.memory_space<vmem>>, vector<8x8x4xf32>
    %47 = vector.shape_cast %46 : vector<8x8x4xf32> to vector<64x4xf32>
    %48 = vector.extract_strided_slice %15 {offsets = [24, 0], sizes = [4, 4], strides = [1, 1]} : vector<36x4xf32> to vector<4x4xf32>
    %cst_57 = arith.constant dense<0.000000e+00> : vector<64x4xf32>
    %49 = tpu.matmul %47, %48, %cst_57 {dimension_numbers = #tpu.dot_dimension_numbers<[1], [0], [0], [1], [0, 0, 1, 1], [], []>} : vector<64x4xf32>, vector<4x4xf32>, vector<64x4xf32> -> vector<64x4xf32>
    %50 = arith.addf %45, %49 : vector<64x4xf32>
    %c1_58 = arith.constant 1 : index
    %c0_59 = arith.constant 0 : index
    %c0_60 = arith.constant 0 : index
    %51 = vector.load %arg6[%c1_58, %c0_59, %c0_60] : memref<9x8x4xf32, #tpu.memory_space<vmem>>, vector<8x8x4xf32>
    %52 = vector.shape_cast %51 : vector<8x8x4xf32> to vector<64x4xf32>
    %53 = vector.extract_strided_slice %15 {offsets = [28, 0], sizes = [4, 4], strides = [1, 1]} : vector<36x4xf32> to vector<4x4xf32>
    %cst_61 = arith.constant dense<0.000000e+00> : vector<64x4xf32>
    %54 = tpu.matmul %52, %53, %cst_61 {dimension_numbers = #tpu.dot_dimension_numbers<[1], [0], [0], [1], [0, 0, 1, 1], [], []>} : vector<64x4xf32>, vector<4x4xf32>, vector<64x4xf32> -> vector<64x4xf32>
    %55 = arith.addf %50, %54 : vector<64x4xf32>
    %c1_62 = arith.constant 1 : index
    %c1_63 = arith.constant 1 : index
    %c0_64 = arith.constant 0 : index
    %56 = vector.load %arg5[%c1_62, %c1_63, %c0_64] : memref<9x9x4xf32, #tpu.memory_space<vmem>>, vector<8x8x4xf32>
    %57 = vector.shape_cast %56 : vector<8x8x4xf32> to vector<64x4xf32>
    %58 = vector.extract_strided_slice %15 {offsets = [32, 0], sizes = [4, 4], strides = [1, 1]} : vector<36x4xf32> to vector<4x4xf32>
    %cst_65 = arith.constant dense<0.000000e+00> : vector<64x4xf32>
    %59 = tpu.matmul %57, %58, %cst_65 {dimension_numbers = #tpu.dot_dimension_numbers<[1], [0], [0], [1], [0, 0, 1, 1], [], []>} : vector<64x4xf32>, vector<4x4xf32>, vector<64x4xf32> -> vector<64x4xf32>
    %60 = arith.addf %55, %59 : vector<64x4xf32>
    %61 = vector.broadcast %16 : vector<1x4xf32> to vector<64x4xf32>
    %62 = arith.addf %60, %61 : vector<64x4xf32>
    %63 = vector.shape_cast %62 : vector<64x4xf32> to vector<8x8x4xf32>
    %c0_66 = arith.constant 0 : index
    %c0_67 = arith.constant 0 : index
    %c0_68 = arith.constant 0 : index
    %c0_69 = arith.constant 0 : index
    %64 = vector.load %arg4[%c0_66, %c0_67, %c0_68, %c0_69] : memref<1x8x8x4xf32, #tpu.memory_space<vmem>>, vector<1x8x8x4xf32>
    %65 = vector.shape_cast %64 : vector<1x8x8x4xf32> to vector<8x8x4xf32>
    %66 = vector.shape_cast %63 : vector<8x8x4xf32> to vector<1x8x8x4xf32>
    tpu.vector_store %arg4[%c0_66, %c0_67, %c0_68, %c0_69], %66 {strides = array<i32>} : memref<1x8x8x4xf32, #tpu.memory_space<vmem>>, vector<1x8x8x4xf32>,
    return
  }
  func.func @transform_0(%arg0: i32) -> (i32, i32, i32, i32) {
    %c0_i32 = arith.constant 0 : i32
    %c0_i32_0 = arith.constant 0 : i32
    %c0_i32_1 = arith.constant 0 : i32
    %c0_i32_2 = arith.constant 0 : i32
    return %arg0, %c0_i32, %c0_i32_0, %c0_i32_1 : i32, i32, i32, i32
  }
  func.func @transform_1(%arg0: i32) -> (i32, i32) {
    %c0_i32 = arith.constant 0 : i32
    %c0_i32_0 = arith.constant 0 : i32
    %c0_i32_1 = arith.constant 0 : i32
    return %c0_i32, %c0_i32_0 : i32, i32
  }
  func.func @transform_2(%arg0: i32) -> (i32, i32) {
    %c0_i32 = arith.constant 0 : i32
    %c0_i32_0 = arith.constant 0 : i32
    %c0_i32_1 = arith.constant 0 : i32
    return %c0_i32, %c0_i32_0 : i32, i32
  }
  func.func @transform_3(%arg0: i32) -> (i32, i32, i32, i32) {
    %c0_i32 = arith.constant 0 : i32
    %c0_i32_0 = arith.constant 0 : i32
    %c0_i32_1 = arith.constant 0 : i32
    %c0_i32_2 = arith.constant 0 : i32
    return %arg0, %c0_i32, %c0_i32_0, %c0_i32_1 : i32, i32, i32, i32
  }
}

</mosaic_0001>

<llo_original>
// kernel: downsample_conv.1
$region0: #{downsample_conv.1}
  #allocation0 [shape = 'u32[]', space=smem, size = 0x4, offset = 0x4, fixed_abs, tag = 'smem constant byte address 0x4 - core index']
  #allocation1 [shape = 'u32[144,128]{1,0:T(1,128)}', space=vmem, size = 0x12000, scoped, tag = 'internal scratch']
  #allocation2 [shape = 'f32[9,9,4]{2,1,0:T(8,128)}', space=vmem, size = 0x12000, scoped, tag = 'scratch operand']
  #allocation3 [shape = 'f32[9,8,4]{2,1,0:T(8,128)}', space=vmem, size = 0x9000, scoped, tag = 'scratch operand']
  #allocation4 [shape = 'f32[8,9,4]{2,1,0:T(8,128)}', space=vmem, size = 0x10000, scoped, tag = 'scratch operand']
  #allocation5 [shape = 'f32[8,8,4]{2,1,0:T(8,128)}', space=vmem, size = 0x8000, scoped, tag = 'scratch operand']
  %s0 = inlined_call_operand.vmem [shape: f32[2,16,16,4], index: 0, kind: input, shape index: {}]
  %s1 = inlined_call_operand.vmem [shape: f32[36,4], index: 1, kind: input, shape index: {}]
  %s2 = inlined_call_operand.vmem [shape: f32[1,4], index: 2, kind: input, shape index: {}]
  %s3 = inlined_call_operand.vmem [shape: f32[2,8,8,4], index: 3, kind: output, shape index: {}]
  %s4 = sld [smem:[#allocation0]]
  $region49: #{downsample_conv.1} parent=0
    _
  %s6 = ssub.s32 1, %s4
  %s7 = scalar_select 0, %s6, %s4
  loop: start=0, step=1, limit=4
  $region2: #{downsample_conv.1} parent=0 // loop_pre_header
    _
  $region3: #{downsample_conv.1} parent=0 // loop_header
    %s9 = sphi 0, %s13
    %p10 = scmp.ge.s32.totalorder %s9, 4
    %s19 = sphi 0, %s21
    %s22 = sphi 0, %s19
    %s23 = sphi 0, %s22
    %s39 = sphi 0, %s23
    %s43 = sphi 0, %s43
    %s45 = sphi 0, %s43
    %s46 = sphi 0, %s45
    %s60 = sphi 0, %s46
    %s64 = sphi 0, %s64
    %s66 = sphi 0, %s64
    %s67 = sphi 0, %s66
    %s81 = sphi 0, %s67
    %s87 = sphi 0, %s89
    %s90 = sphi 0, %s87
    %s91 = sphi 0, %s90
    %s107 = sphi 0, %s91
  $region4: #{downsample_conv.1} parent=0 // loop_header_branch
    %12 = sbr.rel (%p10) target = $region8
  $region5: #{downsample_conv.1} parent=0 // loop_body
    %s14 = ssub.s32 %s9, 1
    %s15 = ssub.s32 %s9, 2
    %s16 = sadd.s32 %s9, 1
    %s17 = ssub.s32 %s9, %s16
    %p18 = scmp.eq.s32.totalorder %s17, 0
    %s20 = sadd.s32 %s19, 1
    %s21 = scalar_select %p18, %s19, %s20
    %p24 = pneg %p18
    %p25 = scmp.eq.s32.totalorder %s9, 1
    %p26 = por %p24, %p25
    %p27 = scmp.ne.s32.totalorder %s19, %s22
    %p28 = scmp.eq.s32.totalorder %s9, 0
    %p29 = por %p27, %p28
    %p30 = scmp.ne.s32.totalorder %s19, %s22
    %p31 = scmp.eq.s32.totalorder %s14, 1
    %p32 = por %p30, %p31
    %p33 = scmp.ne.s32.totalorder %s22, %s23
    %p34 = scmp.eq.s32.totalorder %s14, 0
    %p35 = por %p33, %p34
    %p36 = scmp.ne.s32.totalorder %s22, %s23
    %p37 = scmp.eq.s32.totalorder %s15, 1
    %p38 = por %p36, %p37
    %p40 = scmp.ne.s32.totalorder %s23, %s39
    %p41 = scmp.eq.s32.totalorder %s15, 0
    %p42 = por %p40, %p41
    %s44 = sadd.s32 %s43, 1
    %p47 = scmp.eq.s32.totalorder %s9, 1
    %p48 = scmp.ne.s32.totalorder %s43, %s45
    %p49 = scmp.eq.s32.totalorder %s9, 0
    %p50 = por %p48, %p49
    %p51 = scmp.ne.s32.totalorder %s43, %s45
    %p52 = scmp.eq.s32.totalorder %s14, 1
    %p53 = por %p51, %p52
    %p54 = scmp.ne.s32.totalorder %s45, %s46
    %p55 = scmp.eq.s32.totalorder %s14, 0
    %p56 = por %p54, %p55
    %p57 = scmp.ne.s32.totalorder %s45, %s46
    %p58 = scmp.eq.s32.totalorder %s15, 1
    %p59 = por %p57, %p58
    %p61 = scmp.ne.s32.totalorder %s46, %s60
    %p62 = scmp.eq.s32.totalorder %s15, 0
    %p63 = por %p61, %p62
    %s65 = sadd.s32 %s64, 1
    %p68 = scmp.eq.s32.totalorder %s9, 1
    %p69 = scmp.ne.s32.totalorder %s64, %s66
    %p70 = scmp.eq.s32.totalorder %s9, 0
    %p71 = por %p69, %p70
    %p72 = scmp.ne.s32.totalorder %s64, %s66
    %p73 = scmp.eq.s32.totalorder %s14, 1
    %p74 = por %p72, %p73
    %p75 = scmp.ne.s32.totalorder %s66, %s67
    %p76 = scmp.eq.s32.totalorder %s14, 0
    %p77 = por %p75, %p76
    %p78 = scmp.ne.s32.totalorder %s66, %s67
    %p79 = scmp.eq.s32.totalorder %s15, 1
    %p80 = por %p78, %p79
    %p82 = scmp.ne.s32.totalorder %s67, %s81
    %p83 = scmp.eq.s32.totalorder %s15, 0
    %p84 = por %p82, %p83
    %s85 = ssub.s32 %s9, %s16
    %p86 = scmp.eq.s32.totalorder %s85, 0
    %s88 = sadd.s32 %s87, 1
    %s89 = scalar_select %p86, %s87, %s88
    %p92 = pneg %p86
    %p93 = scmp.eq.s32.totalorder %s9, 1
    %p94 = por %p92, %p93
    %p95 = scmp.ne.s32.totalorder %s87, %s90
    %p96 = scmp.eq.s32.totalorder %s9, 0
    %p97 = por %p95, %p96
    %p98 = scmp.ne.s32.totalorder %s87, %s90
    %p99 = scmp.eq.s32.totalorder %s14, 1
    %p100 = por %p98, %p99
    %p101 = scmp.ne.s32.totalorder %s90, %s91
    %p102 = scmp.eq.s32.totalorder %s14, 0
    %p103 = por %p101, %p102
    %p104 = scmp.ne.s32.totalorder %s90, %s91
    %p105 = scmp.eq.s32.totalorder %s15, 1
    %p106 = por %p104, %p105
    %p108 = scmp.ne.s32.totalorder %s91, %s107
    %p109 = scmp.eq.s32.totalorder %s15, 0
    %p110 = por %p108, %p109
    %p111 = scmp.le.s32.totalorder 1, %s9
    %p112 = scmp.lt.s32.totalorder %s9, 3
    %p113 = pnand %p111, %p112
    %p114 = pneg %p113
    // Predicated region
    $region9: #{downsample_conv.1} parent=5 // pred_check
      _
    $region10: #{downsample_conv.1} parent=5 // pred_check_branch
      %116 = sbr.rel (%p113) target = $region12
    $region11: #{downsample_conv.1} parent=5 // pred_region
      %s117 = ssub.s32 %s9, 1
      // Predicated region
      $region13: #{downsample_conv.1} parent=11 // pred_check
        %p118 = pneg %p56
      $region14: #{downsample_conv.1} parent=11 // pred_check_branch
        %120 = sbr.rel (%p118) target = $region16
      $region15: #{downsample_conv.1} parent=11 // pred_region
        _
      $region16: #{downsample_conv.1} parent=11 // pred_fallthru
        _
      // Predicated region
      $region17: #{downsample_conv.1} parent=11 // pred_check
        %p121 = pneg %p77
      $region18: #{downsample_conv.1} parent=11 // pred_check_branch
        %123 = sbr.rel (%p121) target = $region20
      $region19: #{downsample_conv.1} parent=11 // pred_region
        _
      $region20: #{downsample_conv.1} parent=11 // pred_fallthru
        _
    $region12: #{downsample_conv.1} parent=5 // pred_fallthru
      _
    %p124 = scmp.lt.s32.totalorder %s9, 2
    // Predicated region
    $region21: #{downsample_conv.1} parent=5 // pred_check
      %p125 = pneg %p124
    $region22: #{downsample_conv.1} parent=5 // pred_check_branch
      %127 = sbr.rel (%p125) target = $region24
    $region23: #{downsample_conv.1} parent=5 // pred_region
      // Predicated region
      $region25: #{downsample_conv.1} parent=23 // pred_check
        %p128 = pneg %p29
      $region26: #{downsample_conv.1} parent=23 // pred_check_branch
        %130 = sbr.rel (%p128) target = $region28
      $region27: #{downsample_conv.1} parent=23 // pred_region
        %p131 = scmp.lt.s32.totalorder %s9, 1
        %s132 = scalar_select %p131, %s9, 1
        %s133 = smul.addr %s132, 32
        %s134 = smul.addr %s133, 8
        %s135 = scalar_lea.vmem %s0, %s134
      $region28: #{downsample_conv.1} parent=23 // pred_fallthru
        _
    $region24: #{downsample_conv.1} parent=5 // pred_fallthru
      _
    %p136 = scmp.le.s32.totalorder 1, %s9
    %p137 = scmp.lt.s32.totalorder %s9, 3
    %p138 = pnand %p136, %p137
    %p139 = pneg %p138
    // Predicated region
    $region29: #{downsample_conv.1} parent=5 // pred_check
      _
    $region30: #{downsample_conv.1} parent=5 // pred_check_branch
      %141 = sbr.rel (%p138) target = $region32
    $region31: #{downsample_conv.1} parent=5 // pred_region
      %s142 = ssub.s32 %s9, 1
      %p143 = scmp.lt.s32.totalorder %s14, 1
      %s144 = scalar_select %p143, %s14, 1
      %s145 = smul.addr %s144, 32
      %s146 = smul.addr %s145, 8
      %s147 = scalar_lea.vmem %s0, %s146
      %p148 = pneg %p35
      %p149 = pneg %p32
      %p150 = pneg %p56
      %p151 = pneg %p53
      %p152 = pneg %p77
      %p153 = pneg %p74
      %p154 = pneg %p103
      %p155 = pneg %p100
      %p156 = scmp.lt.s32.totalorder %s14, 1
      %s157 = scalar_select %p156, %s14, 1
      %s158 = smul.addr %s157, 8
      %s159 = smul.addr %s158, 8
      %s160 = scalar_lea.vmem %s3, %s159
      %p161 = scmp.lt.s32.totalorder %s14, 1
      %s162 = scalar_select %p161, %s14, 1
      %s163 = smul.addr %s162, 32
      %s164 = smul.addr %s163, 8
      %s165 = scalar_lea.vmem %s0, %s164
      %p166 = scmp.lt.s32.totalorder %s14, 1
      %s167 = scalar_select %p166, %s14, 1
      %s168 = smul.addr %s167, 8
      %s169 = smul.addr %s168, 8
      %s170 = scalar_lea.vmem %s3, %s169
      %p171 = scmp.eq.s32.totalorder %s14, 0
      // Predicated region
      $region33: #{downsample_conv.1} parent=31 // pred_check
        %p172 = pneg %p171
      $region34: #{downsample_conv.1} parent=31 // pred_check_branch
        %174 = sbr.rel (%p172) target = $region36
      $region35: #{downsample_conv.1} parent=31 // pred_region
        %vm175 = vcmask 31744
        %176 = vst.msk [vmem:[#allocation2] sm:$0xff] %vm175, 0.0
        %vm177 = vcmask 24576
        %178 = vst.msk [vmem:[#allocation2 + $0x8] sm:$0x1] %vm177, 0.0
        %179 = vst.msk [vmem:[#allocation3] sm:$0xff] %vm175, 0.0
        %180 = vst.msk [vmem:[#allocation2] sm:$0x1] %vm177, 0.0
        %181 = vst.msk [vmem:[#allocation2 + $0x10] sm:$0x1] %vm177, 0.0
        %182 = vst.msk [vmem:[#allocation2 + $0x20] sm:$0x1] %vm177, 0.0
        %183 = vst.msk [vmem:[#allocation2 + $0x30] sm:$0x1] %vm177, 0.0
        %184 = vst.msk [vmem:[#allocation2 + $0x40] sm:$0x1] %vm177, 0.0
        %185 = vst.msk [vmem:[#allocation2 + $0x50] sm:$0x1] %vm177, 0.0
        %186 = vst.msk [vmem:[#allocation2 + $0x60] sm:$0x1] %vm177, 0.0
        %187 = vst.msk [vmem:[#allocation2 + $0x70] sm:$0x1] %vm177, 0.0
        %188 = vst.msk [vmem:[#allocation2 + $0x80] sm:$0x1] %vm177, 0.0
        %189 = vst.msk [vmem:[#allocation4] sm:$0x1] %vm177, 0.0
        %190 = vst.msk [vmem:[#allocation4 + $0x10] sm:$0x1] %vm177, 0.0
        %191 = vst.msk [vmem:[#allocation4 + $0x20] sm:$0x1] %vm177, 0.0
        %192 = vst.msk [vmem:[#allocation4 + $0x30] sm:$0x1] %vm177, 0.0
        %193 = vst.msk [vmem:[#allocation4 + $0x40] sm:$0x1] %vm177, 0.0
        %194 = vst.msk [vmem:[#allocation4 + $0x50] sm:$0x1] %vm177, 0.0
        %195 = vst.msk [vmem:[#allocation4 + $0x60] sm:$0x1] %vm177, 0.0
        %196 = vst.msk [vmem:[#allocation4 + $0x70] sm:$0x1] %vm177, 0.0
      $region36: #{downsample_conv.1} parent=31 // pred_fallthru
        _
      %v197 = vld [vmem:[%s165] ss:$2 sm:$0xff]
      %s198 = scalar_lea.vmem %s165, 32
      %v199 = vld [vmem:[%s198] ss:$2 sm:$0xff]
      %s200 = scalar_lea.vmem %s165, 64
      %v201 = vld [vmem:[%s200] ss:$2 sm:$0xff]
      %s202 = scalar_lea.vmem %s165, 96
      %v203 = vld [vmem:[%s202] ss:$2 sm:$0xff]
      %s204 = scalar_lea.vmem %s165, 128
      %v205 = vld [vmem:[%s204] ss:$2 sm:$0xff]
      %s206 = scalar_lea.vmem %s165, 160
      %v207 = vld [vmem:[%s206] ss:$2 sm:$0xff]
      %s208 = scalar_lea.vmem %s165, 192
      %v209 = vld [vmem:[%s208] ss:$2 sm:$0xff]
      %s210 = scalar_lea.vmem %s165, 224
      %v211 = vld [vmem:[%s210] ss:$2 sm:$0xff]
      %vm212 = vcmask 31744
      %213 = vst.msk [vmem:[#allocation5] sm:$0xff] %vm212, %v197
      %214 = vst.msk [vmem:[#allocation5 + $0x8] sm:$0xff] %vm212, %v199
      %215 = vst.msk [vmem:[#allocation5 + $0x10] sm:$0xff] %vm212, %v201
      %216 = vst.msk [vmem:[#allocation5 + $0x18] sm:$0xff] %vm212, %v203
      %217 = vst.msk [vmem:[#allocation5 + $0x20] sm:$0xff] %vm212, %v205
      %218 = vst.msk [vmem:[#allocation5 + $0x28] sm:$0xff] %vm212, %v207
      %219 = vst.msk [vmem:[#allocation5 + $0x30] sm:$0xff] %vm212, %v209
      %220 = vst.msk [vmem:[#allocation5 + $0x38] sm:$0xff] %vm212, %v211
      %s221 = scalar_lea.vmem %s165, 1
      %v222 = vld [vmem:[%s221] ss:$2 sm:$0xff]
      %s223 = scalar_lea.vmem %s165, 33
      %v224 = vld [vmem:[%s223] ss:$2 sm:$0xff]
      %s225 = scalar_lea.vmem %s165, 65
      %v226 = vld [vmem:[%s225] ss:$2 sm:$0xff]
      %s227 = scalar_lea.vmem %s165, 97
      %v228 = vld [vmem:[%s227] ss:$2 sm:$0xff]
      %s229 = scalar_lea.vmem %s165, 129
      %v230 = vld [vmem:[%s229] ss:$2 sm:$0xff]
      %s231 = scalar_lea.vmem %s165, 161
      %v232 = vld [vmem:[%s231] ss:$2 sm:$0xff]
      %s233 = scalar_lea.vmem %s165, 193
      %v234 = vld [vmem:[%s233] ss:$2 sm:$0xff]
      %s235 = scalar_lea.vmem %s165, 225
      %v236 = vld [vmem:[%s235] ss:$2 sm:$0xff]
      %237 = vst.msk [vmem:[#allocation4 + $0x1] sm:$0xff] %vm212, %v222
      %238 = vst.msk [vmem:[#allocation4 + $0x11] sm:$0xff] %vm212, %v224
      %239 = vst.msk [vmem:[#allocation4 + $0x21] sm:$0xff] %vm212, %v226
      %240 = vst.msk [vmem:[#allocation4 + $0x31] sm:$0xff] %vm212, %v228
      %241 = vst.msk [vmem:[#allocation4 + $0x41] sm:$0xff] %vm212, %v230
      %242 = vst.msk [vmem:[#allocation4 + $0x51] sm:$0xff] %vm212, %v232
      %243 = vst.msk [vmem:[#allocation4 + $0x61] sm:$0xff] %vm212, %v234
      %244 = vst.msk [vmem:[#allocation4 + $0x71] sm:$0xff] %vm212, %v236
      %s245 = scalar_lea.vmem %s165, 16
      %v246 = vld [vmem:[%s245] ss:$2 sm:$0xff]
      %s247 = scalar_lea.vmem %s245, 32
      %v248 = vld [vmem:[%s247] ss:$2 sm:$0xff]
      %s249 = scalar_lea.vmem %s245, 64
      %v250 = vld [vmem:[%s249] ss:$2 sm:$0xff]
      %s251 = scalar_lea.vmem %s245, 96
      %v252 = vld [vmem:[%s251] ss:$2 sm:$0xff]
      %s253 = scalar_lea.vmem %s245, 128
      %v254 = vld [vmem:[%s253] ss:$2 sm:$0xff]
      %s255 = scalar_lea.vmem %s245, 160
      %v256 = vld [vmem:[%s255] ss:$2 sm:$0xff]
      %s257 = scalar_lea.vmem %s245, 192
      %v258 = vld [vmem:[%s257] ss:$2 sm:$0xff]
      %s259 = scalar_lea.vmem %s245, 224
      %v260 = vld [vmem:[%s259] ss:$2 sm:$0xff]
      %s261 = scalar_lea.vmem [#allocation3], 8
      %262 = vst.msk [vmem:[%s261] sm:$0xff] %vm212, %v246
      %263 = vst.msk [vmem:[%s261 + $0x8] sm:$0xff] %vm212, %v248
      %264 = vst.msk [vmem:[%s261 + $0x10] sm:$0xff] %vm212, %v250
      %265 = vst.msk [vmem:[%s261 + $0x18] sm:$0xff] %vm212, %v252
      %266 = vst.msk [vmem:[%s261 + $0x20] sm:$0xff] %vm212, %v254
      %267 = vst.msk [vmem:[%s261 + $0x28] sm:$0xff] %vm212, %v256
      %268 = vst.msk [vmem:[%s261 + $0x30] sm:$0xff] %vm212, %v258
      %269 = vst.msk [vmem:[%s261 + $0x38] sm:$0xff] %vm212, %v260
      %s270 = scalar_lea.vmem %s245, 1
      %v271 = vld [vmem:[%s270] ss:$2 sm:$0xff]
      %s272 = scalar_lea.vmem %s245, 33
      %v273 = vld [vmem:[%s272] ss:$2 sm:$0xff]
      %s274 = scalar_lea.vmem %s245, 65
      %v275 = vld [vmem:[%s274] ss:$2 sm:$0xff]
      %s276 = scalar_lea.vmem %s245, 97
      %v277 = vld [vmem:[%s276] ss:$2 sm:$0xff]
      %s278 = scalar_lea.vmem %s245, 129
      %v279 = vld [vmem:[%s278] ss:$2 sm:$0xff]
      %s280 = scalar_lea.vmem %s245, 161
      %v281 = vld [vmem:[%s280] ss:$2 sm:$0xff]
      %s282 = scalar_lea.vmem %s245, 193
      %v283 = vld [vmem:[%s282] ss:$2 sm:$0xff]
      %s284 = scalar_lea.vmem %s245, 225
      %v285 = vld [vmem:[%s284] ss:$2 sm:$0xff]
      %s286 = scalar_lea.vmem [#allocation2], 16
      %287 = vst.msk [vmem:[%s286 + $0x1] sm:$0xff] %vm212, %v271
      %288 = vst.msk [vmem:[%s286 + $0x11] sm:$0xff] %vm212, %v273
      %289 = vst.msk [vmem:[%s286 + $0x21] sm:$0xff] %vm212, %v275
      %290 = vst.msk [vmem:[%s286 + $0x31] sm:$0xff] %vm212, %v277
      %291 = vst.msk [vmem:[%s286 + $0x41] sm:$0xff] %vm212, %v279
      %292 = vst.msk [vmem:[%s286 + $0x51] sm:$0xff] %vm212, %v281
      %293 = vst.msk [vmem:[%s286 + $0x61] sm:$0xff] %vm212, %v283
      %294 = vst.msk [vmem:[%s286 + $0x71] sm:$0xff] %vm212, %v285
      %v295 = vld [vmem:[%s1] sm:$0xff]
      %v296 = vld [vmem:[%s1 + $0x8] sm:$0xff]
      %v297 = vld [vmem:[%s1 + $0x10] sm:$0xff]
      %v298 = vld [vmem:[%s1 + $0x18] sm:$0xff]
      %v299 = vld [vmem:[%s1 + $0x20] sm:$0xf]
      %v300 = vld [vmem:[%s2] sm:$0x1]
      %v301 = vld [vmem:[#allocation2] sm:$0xff]
      %v302 = vld [vmem:[#allocation2 + $0x10] sm:$0xff]
      %v303 = vld [vmem:[#allocation2 + $0x20] sm:$0xff]
      %v304 = vld [vmem:[#allocation2 + $0x30] sm:$0xff]
      %v305 = vld [vmem:[#allocation2 + $0x40] sm:$0xff]
      %v306 = vld [vmem:[#allocation2 + $0x50] sm:$0xff]
      %v307 = vld [vmem:[#allocation2 + $0x60] sm:$0xff]
      %v308 = vld [vmem:[#allocation2 + $0x70] sm:$0xff]
      %v309 = vld [vmem:[#allocation3] sm:$0xff]
      %v310 = vld [vmem:[#allocation3 + $0x8] sm:$0xff]
      %v311 = vld [vmem:[#allocation3 + $0x10] sm:$0xff]
      %v312 = vld [vmem:[#allocation3 + $0x18] sm:$0xff]
      %v313 = vld [vmem:[#allocation3 + $0x20] sm:$0xff]
      %v314 = vld [vmem:[#allocation3 + $0x28] sm:$0xff]
      %v315 = vld [vmem:[#allocation3 + $0x30] sm:$0xff]
      %v316 = vld [vmem:[#allocation3 + $0x38] sm:$0xff]
      %v318 = vrot.slane %v295, 4
      %v320 = vsel %vm212, %v309, 0
      %v323 = vsel %vm212, %v310, 0
      %v326 = vsel %vm212, %v311, 0
      %v329 = vsel %vm212, %v312, 0
      %v332 = vsel %vm212, %v313, 0
      %v335 = vsel %vm212, %v314, 0
      %v338 = vsel %vm212, %v315, 0
      %v341 = vsel %vm212, %v316, 0
      %vm343 = vcmask 1043456
      %v344 = vsel %vm343, %v318, 0
      %346 = vmatprep.subr.mxu0 0.0
      %347 = vmatpush1.msra.mxu0 %v344
      %348 = vmatprep.subr.mxu0 0.0
      %349 = vmatpush1.msra.mxu0 0.0
      %350 = vmatprep.subr.mxu0 0.0
      %351 = vmatpush1.msra.mxu0 0.0
      %352 = vmatprep.subr.mxu0 0.0
      %353 = vmatpush1.msra.mxu0 0.0
      %354 = vmatprep.subr.mxu0 0.0
      %355 = vmatpush1.msra.mxu0 0.0
      %356 = vmatprep.subr.mxu0 0.0
      %357 = vmatpush1.msra.mxu0 0.0
      %358 = vmatprep.subr.mxu0 0.0
      %359 = vmatpush1.msra.mxu0 0.0
      %360 = vmatprep.subr.mxu0 0.0
      %361 = vmatpush1.msra.mxu0 0.0
      %362 = vmatprep.subr.mxu0 0.0
      %363 = vmatpush1.msra.mxu0 0.0
      %364 = vmatprep.subr.mxu0 0.0
      %365 = vmatpush1.msra.mxu0 0.0
      %366 = vmatprep.subr.mxu0 0.0
      %367 = vmatpush1.msra.mxu0 0.0
      %368 = vmatprep.subr.mxu0 0.0
      %369 = vmatpush1.msra.mxu0 0.0
      %370 = vmatprep.subr.mxu0 0.0
      %371 = vmatpush1.msra.mxu0 0.0
      %372 = vmatprep.subr.mxu0 0.0
      %373 = vmatpush1.msra.mxu0 0.0
      %374 = vmatprep.subr.mxu0 0.0
      %375 = vmatpush1.msra.mxu0 0.0
      %376 = vmatprep.subr.mxu0 0.0
      %377 = vmatpush1.msra.mxu0 0.0
      %378 = vmatprep.subr.mxu0 0.0
      %379 = vmatpush1.msra.mxu0 0.0
      %380 = vmatprep.subr.mxu0 0.0
      %381 = vmatpush1.msra.mxu0 0.0
      %382 = vmatprep.subr.mxu0 0.0
      %383 = vmatpush1.msra.mxu0 0.0
      %384 = vmatprep.subr.mxu0 0.0
      %385 = vmatpush1.msra.mxu0 0.0
      %386 = vmatprep.subr.mxu0 0.0
      %387 = vmatpush1.msra.mxu0 0.0
      %388 = vmatprep.subr.mxu0 0.0
      %389 = vmatpush1.msra.mxu0 0.0
      %390 = vmatprep.subr.mxu0 0.0
      %391 = vmatpush1.msra.mxu0 0.0
      %392 = vmatprep.subr.mxu0 0.0
      %393 = vmatpush1.msra.mxu0 0.0
      %394 = vmatprep.subr.mxu0 0.0
      %395 = vmatpush1.msra.mxu0 0.0
      %396 = vmatprep.subr.mxu0 0.0
      %397 = vmatpush1.msra.mxu0 0.0
      %398 = vmatprep.subr.mxu0 0.0
      %399 = vmatpush1.msra.mxu0 0.0
      %400 = vmatprep.subr.mxu0 0.0
      %401 = vmatpush1.msra.mxu0 0.0
      %402 = vmatprep.subr.mxu0 0.0
      %403 = vmatpush1.msra.mxu0 0.0
      %404 = vmatprep.subr.mxu0 0.0
      %405 = vmatpush1.msra.mxu0 0.0
      %406 = vmatprep.subr.mxu0 0.0
      %407 = vmatpush1.msra.mxu0 0.0
      %408 = vmatprep.subr.mxu0 0.0
      %409 = vmatpush1.msra.mxu0 0.0
      %410 = vmatprep.mubr.f32.mxu0 0.0
      %411 = vmatmul.mubr.f32.gmra.mrb[0].mxu0 %v320
      %v412 = vpop.f32.mrb[0].mxu0
      %v413 = vadd.f32 0.0, %v412
      %v414 = vpop.f32.mrb[0].mxu0
      %415 = vmatprep.mubr.f32.mxu0 0.0
      %416 = vmatmul.mubr.f32.gmra.mrb[0].mxu0 %v323
      %v417 = vpop.f32.mrb[0].mxu0
      %v418 = vadd.f32 0.0, %v417
      %v419 = vpop.f32.mrb[0].mxu0
      %420 = vmatprep.mubr.f32.mxu0 0.0
      %421 = vmatmul.mubr.f32.gmra.mrb[0].mxu0 %v326
      %v422 = vpop.f32.mrb[0].mxu0
      %v423 = vadd.f32 0.0, %v422
      %v424 = vpop.f32.mrb[0].mxu0
      %425 = vmatprep.mubr.f32.mxu0 0.0
      %426 = vmatmul.mubr.f32.gmra.mrb[0].mxu0 %v329
      %v427 = vpop.f32.mrb[0].mxu0
      %v428 = vadd.f32 0.0, %v427
      %v429 = vpop.f32.mrb[0].mxu0
      %430 = vmatprep.mubr.f32.mxu0 0.0
      %431 = vmatmul.mubr.f32.gmra.mrb[0].mxu0 %v332
      %v432 = vpop.f32.mrb[0].mxu0
      %v433 = vadd.f32 0.0, %v432
      %v434 = vpop.f32.mrb[0].mxu0
      %435 = vmatprep.mubr.f32.mxu0 0.0
      %436 = vmatmul.mubr.f32.gmra.mrb[0].mxu0 %v335
      %v437 = vpop.f32.mrb[0].mxu0
      %v438 = vadd.f32 0.0, %v437
      %v439 = vpop.f32.mrb[0].mxu0
      %440 = vmatprep.mubr.f32.mxu0 0.0
      %441 = vmatmul.mubr.f32.gmra.mrb[0].mxu0 %v338
      %v442 = vpop.f32.mrb[0].mxu0
      %v443 = vadd.f32 0.0, %v442
      %v444 = vpop.f32.mrb[0].mxu0
      %445 = vmatprep.mubr.f32.mxu0 0.0
      %446 = vmatmul.mubr.f32.gmra.mrb[0].mxu0 %v341
      %v447 = vpop.f32.mrb[0].mxu0
      %v448 = vadd.f32 0.0, %v447
      %v449 = vpop.f32.mrb[0].mxu0
      %450 = vdwg.mxu0
      %v452 = vsel %vm212, %v301, 0
      %v455 = vsel %vm212, %v302, 0
      %v458 = vsel %vm212, %v303, 0
      %v461 = vsel %vm212, %v304, 0
      %v464 = vsel %vm212, %v305, 0
      %v467 = vsel %vm212, %v306, 0
      %v470 = vsel %vm212, %v307, 0
      %v473 = vsel %vm212, %v308, 0
      %v475 = vsel %vm343, %v295, 0
      %477 = vmatprep.subr.mxu0 0.0
      %478 = vmatpush1.msra.mxu0 %v475
      %479 = vmatprep.subr.mxu0 0.0
      %480 = vmatpush1.msra.mxu0 0.0
      %481 = vmatprep.subr.mxu0 0.0
      %482 = vmatpush1.msra.mxu0 0.0
      %483 = vmatprep.subr.mxu0 0.0
      %484 = vmatpush1.msra.mxu0 0.0
      %485 = vmatprep.subr.mxu0 0.0
      %486 = vmatpush1.msra.mxu0 0.0
      %487 = vmatprep.subr.mxu0 0.0
      %488 = vmatpush1.msra.mxu0 0.0
      %489 = vmatprep.subr.mxu0 0.0
      %490 = vmatpush1.msra.mxu0 0.0
      %491 = vmatprep.subr.mxu0 0.0
      %492 = vmatpush1.msra.mxu0 0.0
      %493 = vmatprep.subr.mxu0 0.0
      %494 = vmatpush1.msra.mxu0 0.0
      %495 = vmatprep.subr.mxu0 0.0
      %496 = vmatpush1.msra.mxu0 0.0
      %497 = vmatprep.subr.mxu0 0.0
      %498 = vmatpush1.msra.mxu0 0.0
      %499 = vmatprep.subr.mxu0 0.0
      %500 = vmatpush1.msra.mxu0 0.0
      %501 = vmatprep.subr.mxu0 0.0
      %502 = vmatpush1.msra.mxu0 0.0
      %503 = vmatprep.subr.mxu0 0.0
      %504 = vmatpush1.msra.mxu0 0.0
      %505 = vmatprep.subr.mxu0 0.0
      %506 = vmatpush1.msra.mxu0 0.0
      %507 = vmatprep.subr.mxu0 0.0
      %508 = vmatpush1.msra.mxu0 0.0
      %509 = vmatprep.subr.mxu0 0.0
      %510 = vmatpush1.msra.mxu0 0.0
      %511 = vmatprep.subr.mxu0 0.0
      %512 = vmatpush1.msra.mxu0 0.0
      %513 = vmatprep.subr.mxu0 0.0
      %514 = vmatpush1.msra.mxu0 0.0
      %515 = vmatprep.subr.mxu0 0.0
      %516 = vmatpush1.msra.mxu0 0.0
      %517 = vmatprep.subr.mxu0 0.0
      %518 = vmatpush1.msra.mxu0 0.0
      %519 = vmatprep.subr.mxu0 0.0
      %520 = vmatpush1.msra.mxu0 0.0
      %521 = vmatprep.subr.mxu0 0.0
      %522 = vmatpush1.msra.mxu0 0.0
      %523 = vmatprep.subr.mxu0 0.0
      %524 = vmatpush1.msra.mxu0 0.0
      %525 = vmatprep.subr.mxu0 0.0
      %526 = vmatpush1.msra.mxu0 0.0
      %527 = vmatprep.subr.mxu0 0.0
      %528 = vmatpush1.msra.mxu0 0.0
      %529 = vmatprep.subr.mxu0 0.0
      %530 = vmatpush1.msra.mxu0 0.0
      %531 = vmatprep.subr.mxu0 0.0
      %532 = vmatpush1.msra.mxu0 0.0
      %533 = vmatprep.subr.mxu0 0.0
      %534 = vmatpush1.msra.mxu0 0.0
      %535 = vmatprep.subr.mxu0 0.0
      %536 = vmatpush1.msra.mxu0 0.0
      %537 = vmatprep.subr.mxu0 0.0
      %538 = vmatpush1.msra.mxu0 0.0
      %539 = vmatprep.subr.mxu0 0.0
      %540 = vmatpush1.msra.mxu0 0.0
      %541 = vmatprep.mubr.f32.mxu0 0.0
      %542 = vmatmul.mubr.f32.gmra.mrb[0].mxu0 %v452
      %v543 = vpop.f32.mrb[0].mxu0
      %v544 = vadd.f32 %v413, %v543
      %v545 = vpop.f32.mrb[0].mxu0
      %546 = vmatprep.mubr.f32.mxu0 0.0
      %547 = vmatmul.mubr.f32.gmra.mrb[0].mxu0 %v455
      %v548 = vpop.f32.mrb[0].mxu0
      %v549 = vadd.f32 %v418, %v548
      %v550 = vpop.f32.mrb[0].mxu0
      %551 = vmatprep.mubr.f32.mxu0 0.0
      %552 = vmatmul.mubr.f32.gmra.mrb[0].mxu0 %v458
      %v553 = vpop.f32.mrb[0].mxu0
      %v554 = vadd.f32 %v423, %v553
      %v555 = vpop.f32.mrb[0].mxu0
      %556 = vmatprep.mubr.f32.mxu0 0.0
      %557 = vmatmul.mubr.f32.gmra.mrb[0].mxu0 %v461
      %v558 = vpop.f32.mrb[0].mxu0
      %v559 = vadd.f32 %v428, %v558
      %v560 = vpop.f32.mrb[0].mxu0
      %561 = vmatprep.mubr.f32.mxu0 0.0
      %562 = vmatmul.mubr.f32.gmra.mrb[0].mxu0 %v464
      %v563 = vpop.f32.mrb[0].mxu0
      %v564 = vadd.f32 %v433, %v563
      %v565 = vpop.f32.mrb[0].mxu0
      %566 = vmatprep.mubr.f32.mxu0 0.0
      %567 = vmatmul.mubr.f32.gmra.mrb[0].mxu0 %v467
      %v568 = vpop.f32.mrb[0].mxu0
      %v569 = vadd.f32 %v438, %v568
      %v570 = vpop.f32.mrb[0].mxu0
      %571 = vmatprep.mubr.f32.mxu0 0.0
      %572 = vmatmul.mubr.f32.gmra.mrb[0].mxu0 %v470
      %v573 = vpop.f32.mrb[0].mxu0
      %v574 = vadd.f32 %v443, %v573
      %v575 = vpop.f32.mrb[0].mxu0
      %576 = vmatprep.mubr.f32.mxu0 0.0
      %577 = vmatmul.mubr.f32.gmra.mrb[0].mxu0 %v473
      %v578 = vpop.f32.mrb[0].mxu0
      %v579 = vadd.f32 %v448, %v578
      %v580 = vpop.f32.mrb[0].mxu0
      %581 = vdwg.mxu0
      %v582 = vld [vmem:[#allocation2 + $0x1] sm:$0xff]
      %v583 = vld [vmem:[#allocation2 + $0x11] sm:$0xff]
      %v584 = vld [vmem:[#allocation2 + $0x21] sm:$0xff]
      %v585 = vld [vmem:[#allocation2 + $0x31] sm:$0xff]
      %v586 = vld [vmem:[#allocation2 + $0x41] sm:$0xff]
      %v587 = vld [vmem:[#allocation2 + $0x51] sm:$0xff]
      %v588 = vld [vmem:[#allocation2 + $0x61] sm:$0xff]
      %v589 = vld [vmem:[#allocation2 + $0x71] sm:$0xff]
      %v591 = vsel %vm212, %v582, 0
      %v594 = vsel %vm212, %v583, 0
      %v597 = vsel %vm212, %v584, 0
      %v600 = vsel %vm212, %v585, 0
      %v603 = vsel %vm212, %v586, 0
      %v606 = vsel %vm212, %v587, 0
      %v609 = vsel %vm212, %v588, 0
      %v612 = vsel %vm212, %v589, 0
      %v615 = vsel %vm343, %v296, 0
      %617 = vmatprep.subr.mxu0 0.0
      %618 = vmatpush1.msra.mxu0 %v615
      %619 = vmatprep.subr.mxu0 0.0
      %620 = vmatpush1.msra.mxu0 0.0
      %621 = vmatprep.subr.mxu0 0.0
      %622 = vmatpush1.msra.mxu0 0.0
      %623 = vmatprep.subr.mxu0 0.0
      %624 = vmatpush1.msra.mxu0 0.0
      %625 = vmatprep.subr.mxu0 0.0
      %626 = vmatpush1.msra.mxu0 0.0
      %627 = vmatprep.subr.mxu0 0.0
      %628 = vmatpush1.msra.mxu0 0.0
      %629 = vmatprep.subr.mxu0 0.0
      %630 = vmatpush1.msra.mxu0 0.0
      %631 = vmatprep.subr.mxu0 0.0
      %632 = vmatpush1.msra.mxu0 0.0
      %633 = vmatprep.subr.mxu0 0.0
      %634 = vmatpush1.msra.mxu0 0.0
      %635 = vmatprep.subr.mxu0 0.0
      %636 = vmatpush1.msra.mxu0 0.0
      %637 = vmatprep.subr.mxu0 0.0
      %638 = vmatpush1.msra.mxu0 0.0
      %639 = vmatprep.subr.mxu0 0.0
      %640 = vmatpush1.msra.mxu0 0.0
      %641 = vmatprep.subr.mxu0 0.0
      %642 = vmatpush1.msra.mxu0 0.0
      %643 = vmatprep.subr.mxu0 0.0
      %644 = vmatpush1.msra.mxu0 0.0
      %645 = vmatprep.subr.mxu0 0.0
      %646 = vmatpush1.msra.mxu0 0.0
      %647 = vmatprep.subr.mxu0 0.0
      %648 = vmatpush1.msra.mxu0 0.0
      %649 = vmatprep.subr.mxu0 0.0
      %650 = vmatpush1.msra.mxu0 0.0
      %651 = vmatprep.subr.mxu0 0.0
      %652 = vmatpush1.msra.mxu0 0.0
      %653 = vmatprep.subr.mxu0 0.0
      %654 = vmatpush1.msra.mxu0 0.0
      %655 = vmatprep.subr.mxu0 0.0
      %656 = vmatpush1.msra.mxu0 0.0
      %657 = vmatprep.subr.mxu0 0.0
      %658 = vmatpush1.msra.mxu0 0.0
      %659 = vmatprep.subr.mxu0 0.0
      %660 = vmatpush1.msra.mxu0 0.0
      %661 = vmatprep.subr.mxu0 0.0
      %662 = vmatpush1.msra.mxu0 0.0
      %663 = vmatprep.subr.mxu0 0.0
      %664 = vmatpush1.msra.mxu0 0.0
      %665 = vmatprep.subr.mxu0 0.0
      %666 = vmatpush1.msra.mxu0 0.0
      %667 = vmatprep.subr.mxu0 0.0
      %668 = vmatpush1.msra.mxu0 0.0
      %669 = vmatprep.subr.mxu0 0.0
      %670 = vmatpush1.msra.mxu0 0.0
      %671 = vmatprep.subr.mxu0 0.0
      %672 = vmatpush1.msra.mxu0 0.0
      %673 = vmatprep.subr.mxu0 0.0
      %674 = vmatpush1.msra.mxu0 0.0
      %675 = vmatprep.subr.mxu0 0.0
      %676 = vmatpush1.msra.mxu0 0.0
      %677 = vmatprep.subr.mxu0 0.0
      %678 = vmatpush1.msra.mxu0 0.0
      %679 = vmatprep.subr.mxu0 0.0
      %680 = vmatpush1.msra.mxu0 0.0
      %681 = vmatprep.mubr.f32.mxu0 0.0
      %682 = vmatmul.mubr.f32.gmra.mrb[0].mxu0 %v591
      %v683 = vpop.f32.mrb[0].mxu0
      %v684 = vadd.f32 0.0, %v683
      %v685 = vpop.f32.mrb[0].mxu0
      %686 = vmatprep.mubr.f32.mxu0 0.0
      %687 = vmatmul.mubr.f32.gmra.mrb[0].mxu0 %v594
      %v688 = vpop.f32.mrb[0].mxu0
      %v689 = vadd.f32 0.0, %v688
      %v690 = vpop.f32.mrb[0].mxu0
      %691 = vmatprep.mubr.f32.mxu0 0.0
      %692 = vmatmul.mubr.f32.gmra.mrb[0].mxu0 %v597
      %v693 = vpop.f32.mrb[0].mxu0
      %v694 = vadd.f32 0.0, %v693
      %v695 = vpop.f32.mrb[0].mxu0
      %696 = vmatprep.mubr.f32.mxu0 0.0
      %697 = vmatmul.mubr.f32.gmra.mrb[0].mxu0 %v600
      %v698 = vpop.f32.mrb[0].mxu0
      %v699 = vadd.f32 0.0, %v698
      %v700 = vpop.f32.mrb[0].mxu0
      %701 = vmatprep.mubr.f32.mxu0 0.0
      %702 = vmatmul.mubr.f32.gmra.mrb[0].mxu0 %v603
      %v703 = vpop.f32.mrb[0].mxu0
      %v704 = vadd.f32 0.0, %v703
      %v705 = vpop.f32.mrb[0].mxu0
      %706 = vmatprep.mubr.f32.mxu0 0.0
      %707 = vmatmul.mubr.f32.gmra.mrb[0].mxu0 %v606
      %v708 = vpop.f32.mrb[0].mxu0
      %v709 = vadd.f32 0.0, %v708
      %v710 = vpop.f32.mrb[0].mxu0
      %711 = vmatprep.mubr.f32.mxu0 0.0
      %712 = vmatmul.mubr.f32.gmra.mrb[0].mxu0 %v609
      %v713 = vpop.f32.mrb[0].mxu0
      %v714 = vadd.f32 0.0, %v713
      %v715 = vpop.f32.mrb[0].mxu0
      %716 = vmatprep.mubr.f32.mxu0 0.0
      %717 = vmatmul.mubr.f32.gmra.mrb[0].mxu0 %v612
      %v718 = vpop.f32.mrb[0].mxu0
      %v719 = vadd.f32 0.0, %v718
      %v720 = vpop.f32.mrb[0].mxu0
      %721 = vdwg.mxu0
      %v722 = vadd.f32 %v544, %v684
      %v723 = vadd.f32 %v549, %v689
      %v724 = vadd.f32 %v554, %v694
      %v725 = vadd.f32 %v559, %v699
      %v726 = vadd.f32 %v564, %v704
      %v727 = vadd.f32 %v569, %v709
      %v728 = vadd.f32 %v574, %v714
      %v729 = vadd.f32 %v579, %v719
      %v730 = vld [vmem:[#allocation4] sm:$0xff]
      %v731 = vld [vmem:[#allocation4 + $0x10] sm:$0xff]
      %v732 = vld [vmem:[#allocation4 + $0x20] sm:$0xff]
      %v733 = vld [vmem:[#allocation4 + $0x30] sm:$0xff]
      %v734 = vld [vmem:[#allocation4 + $0x40] sm:$0xff]
      %v735 = vld [vmem:[#allocation4 + $0x50] sm:$0xff]
      %v736 = vld [vmem:[#allocation4 + $0x60] sm:$0xff]
      %v737 = vld [vmem:[#allocation4 + $0x70] sm:$0xff]
      %v738 = vrot.slane %v296, 4
      %v740 = vsel %vm212, %v730, 0
      %v743 = vsel %vm212, %v731, 0
      %v746 = vsel %vm212, %v732, 0
      %v749 = vsel %vm212, %v733, 0
      %v752 = vsel %vm212, %v734, 0
      %v755 = vsel %vm212, %v735, 0
      %v758 = vsel %vm212, %v736, 0
      %v761 = vsel %vm212, %v737, 0
      %v763 = vsel %vm343, %v738, 0
      %765 = vmatprep.subr.mxu0 0.0
      %766 = vmatpush1.msra.mxu0 %v763
      %767 = vmatprep.subr.mxu0 0.0
      %768 = vmatpush1.msra.mxu0 0.0
      %769 = vmatprep.subr.mxu0 0.0
      %770 = vmatpush1.msra.mxu0 0.0
      %771 = vmatprep.subr.mxu0 0.0
      %772 = vmatpush1.msra.mxu0 0.0
      %773 = vmatprep.subr.mxu0 0.0
      %774 = vmatpush1.msra.mxu0 0.0
      %775 = vmatprep.subr.mxu0 0.0
      %776 = vmatpush1.msra.mxu0 0.0
      %777 = vmatprep.subr.mxu0 0.0
      %778 = vmatpush1.msra.mxu0 0.0
      %779 = vmatprep.subr.mxu0 0.0
      %780 = vmatpush1.msra.mxu0 0.0
      %781 = vmatprep.subr.mxu0 0.0
      %782 = vmatpush1.msra.mxu0 0.0
      %783 = vmatprep.subr.mxu0 0.0
      %784 = vmatpush1.msra.mxu0 0.0
      %785 = vmatprep.subr.mxu0 0.0
      %786 = vmatpush1.msra.mxu0 0.0
      %787 = vmatprep.subr.mxu0 0.0
      %788 = vmatpush1.msra.mxu0 0.0
      %789 = vmatprep.subr.mxu0 0.0
      %790 = vmatpush1.msra.mxu0 0.0
      %791 = vmatprep.subr.mxu0 0.0
      %792 = vmatpush1.msra.mxu0 0.0
      %793 = vmatprep.subr.mxu0 0.0
      %794 = vmatpush1.msra.mxu0 0.0
      %795 = vmatprep.subr.mxu0 0.0
      %796 = vmatpush1.msra.mxu0 0.0
      %797 = vmatprep.subr.mxu0 0.0
      %798 = vmatpush1.msra.mxu0 0.0
      %799 = vmatprep.subr.mxu0 0.0
      %800 = vmatpush1.msra.mxu0 0.0
      %801 = vmatprep.subr.mxu0 0.0
      %802 = vmatpush1.msra.mxu0 0.0
      %803 = vmatprep.subr.mxu0 0.0
      %804 = vmatpush1.msra.mxu0 0.0
      %805 = vmatprep.subr.mxu0 0.0
      %806 = vmatpush1.msra.mxu0 0.0
      %807 = vmatprep.subr.mxu0 0.0
      %808 = vmatpush1.msra.mxu0 0.0
      %809 = vmatprep.subr.mxu0 0.0
      %810 = vmatpush1.msra.mxu0 0.0
      %811 = vmatprep.subr.mxu0 0.0
      %812 = vmatpush1.msra.mxu0 0.0
      %813 = vmatprep.subr.mxu0 0.0
      %814 = vmatpush1.msra.mxu0 0.0
      %815 = vmatprep.subr.mxu0 0.0
      %816 = vmatpush1.msra.mxu0 0.0
      %817 = vmatprep.subr.mxu0 0.0
      %818 = vmatpush1.msra.mxu0 0.0
      %819 = vmatprep.subr.mxu0 0.0
      %820 = vmatpush1.msra.mxu0 0.0
      %821 = vmatprep.subr.mxu0 0.0
      %822 = vmatpush1.msra.mxu0 0.0
      %823 = vmatprep.subr.mxu0 0.0
      %824 = vmatpush1.msra.mxu0 0.0
      %825 = vmatprep.subr.mxu0 0.0
      %826 = vmatpush1.msra.mxu0 0.0
      %827 = vmatprep.subr.mxu0 0.0
      %828 = vmatpush1.msra.mxu0 0.0
      %829 = vmatprep.mubr.f32.mxu0 0.0
      %830 = vmatmul.mubr.f32.gmra.mrb[0].mxu0 %v740
      %v831 = vpop.f32.mrb[0].mxu0
      %v832 = vadd.f32 0.0, %v831
      %v833 = vpop.f32.mrb[0].mxu0
      %834 = vmatprep.mubr.f32.mxu0 0.0
      %835 = vmatmul.mubr.f32.gmra.mrb[0].mxu0 %v743
      %v836 = vpop.f32.mrb[0].mxu0
      %v837 = vadd.f32 0.0, %v836
      %v838 = vpop.f32.mrb[0].mxu0
      %839 = vmatprep.mubr.f32.mxu0 0.0
      %840 = vmatmul.mubr.f32.gmra.mrb[0].mxu0 %v746
      %v841 = vpop.f32.mrb[0].mxu0
      %v842 = vadd.f32 0.0, %v841
      %v843 = vpop.f32.mrb[0].mxu0
      %844 = vmatprep.mubr.f32.mxu0 0.0
      %845 = vmatmul.mubr.f32.gmra.mrb[0].mxu0 %v749
      %v846 = vpop.f32.mrb[0].mxu0
      %v847 = vadd.f32 0.0, %v846
      %v848 = vpop.f32.mrb[0].mxu0
      %849 = vmatprep.mubr.f32.mxu0 0.0
      %850 = vmatmul.mubr.f32.gmra.mrb[0].mxu0 %v752
      %v851 = vpop.f32.mrb[0].mxu0
      %v852 = vadd.f32 0.0, %v851
      %v853 = vpop.f32.mrb[0].mxu0
      %854 = vmatprep.mubr.f32.mxu0 0.0
      %855 = vmatmul.mubr.f32.gmra.mrb[0].mxu0 %v755
      %v856 = vpop.f32.mrb[0].mxu0
      %v857 = vadd.f32 0.0, %v856
      %v858 = vpop.f32.mrb[0].mxu0
      %859 = vmatprep.mubr.f32.mxu0 0.0
      %860 = vmatmul.mubr.f32.gmra.mrb[0].mxu0 %v758
      %v861 = vpop.f32.mrb[0].mxu0
      %v862 = vadd.f32 0.0, %v861
      %v863 = vpop.f32.mrb[0].mxu0
      %864 = vmatprep.mubr.f32.mxu0 0.0
      %865 = vmatmul.mubr.f32.gmra.mrb[0].mxu0 %v761
      %v866 = vpop.f32.mrb[0].mxu0
      %v867 = vadd.f32 0.0, %v866
      %v868 = vpop.f32.mrb[0].mxu0
      %869 = vdwg.mxu0
      %v870 = vadd.f32 %v722, %v832
      %v871 = vadd.f32 %v723, %v837
      %v872 = vadd.f32 %v724, %v842
      %v873 = vadd.f32 %v725, %v847
      %v874 = vadd.f32 %v726, %v852
      %v875 = vadd.f32 %v727, %v857
      %v876 = vadd.f32 %v728, %v862
      %v877 = vadd.f32 %v729, %v867
      %v878 = vld [vmem:[#allocation5] sm:$0xff]
      %v879 = vld [vmem:[#allocation5 + $0x8] sm:$0xff]
      %v880 = vld [vmem:[#allocation5 + $0x10] sm:$0xff]
      %v881 = vld [vmem:[#allocation5 + $0x18] sm:$0xff]
      %v882 = vld [vmem:[#allocation5 + $0x20] sm:$0xff]
      %v883 = vld [vmem:[#allocation5 + $0x28] sm:$0xff]
      %v884 = vld [vmem:[#allocation5 + $0x30] sm:$0xff]
      %v885 = vld [vmem:[#allocation5 + $0x38] sm:$0xff]
      %v887 = vsel %vm212, %v878, 0
      %v890 = vsel %vm212, %v879, 0
      %v893 = vsel %vm212, %v880, 0
      %v896 = vsel %vm212, %v881, 0
      %v899 = vsel %vm212, %v882, 0
      %v902 = vsel %vm212, %v883, 0
      %v905 = vsel %vm212, %v884, 0
      %v908 = vsel %vm212, %v885, 0
      %v911 = vsel %vm343, %v297, 0
      %913 = vmatprep.subr.mxu0 0.0
      %914 = vmatpush1.msra.mxu0 %v911
      %915 = vmatprep.subr.mxu0 0.0
      %916 = vmatpush1.msra.mxu0 0.0
      %917 = vmatprep.subr.mxu0 0.0
      %918 = vmatpush1.msra.mxu0 0.0
      %919 = vmatprep.subr.mxu0 0.0
      %920 = vmatpush1.msra.mxu0 0.0
      %921 = vmatprep.subr.mxu0 0.0
      %922 = vmatpush1.msra.mxu0 0.0
      %923 = vmatprep.subr.mxu0 0.0
      %924 = vmatpush1.msra.mxu0 0.0
      %925 = vmatprep.subr.mxu0 0.0
      %926 = vmatpush1.msra.mxu0 0.0
      %927 = vmatprep.subr.mxu0 0.0
      %928 = vmatpush1.msra.mxu0 0.0
      %929 = vmatprep.subr.mxu0 0.0
      %930 = vmatpush1.msra.mxu0 0.0
      %931 = vmatprep.subr.mxu0 0.0
      %932 = vmatpush1.msra.mxu0 0.0
      %933 = vmatprep.subr.mxu0 0.0
      %934 = vmatpush1.msra.mxu0 0.0
      %935 = vmatprep.subr.mxu0 0.0
      %936 = vmatpush1.msra.mxu0 0.0
      %937 = vmatprep.subr.mxu0 0.0
      %938 = vmatpush1.msra.mxu0 0.0
      %939 = vmatprep.subr.mxu0 0.0
      %940 = vmatpush1.msra.mxu0 0.0
      %941 = vmatprep.subr.mxu0 0.0
      %942 = vmatpush1.msra.mxu0 0.0
      %943 = vmatprep.subr.mxu0 0.0
      %944 = vmatpush1.msra.mxu0 0.0
      %945 = vmatprep.subr.mxu0 0.0
      %946 = vmatpush1.msra.mxu0 0.0
      %947 = vmatprep.subr.mxu0 0.0
      %948 = vmatpush1.msra.mxu0 0.0
      %949 = vmatprep.subr.mxu0 0.0
      %950 = vmatpush1.msra.mxu0 0.0
      %951 = vmatprep.subr.mxu0 0.0
      %952 = vmatpush1.msra.mxu0 0.0
      %953 = vmatprep.subr.mxu0 0.0
      %954 = vmatpush1.msra.mxu0 0.0
      %955 = vmatprep.subr.mxu0 0.0
      %956 = vmatpush1.msra.mxu0 0.0
      %957 = vmatprep.subr.mxu0 0.0
      %958 = vmatpush1.msra.mxu0 0.0
      %959 = vmatprep.subr.mxu0 0.0
      %960 = vmatpush1.msra.mxu0 0.0
      %961 = vmatprep.subr.mxu0 0.0
      %962 = vmatpush1.msra.mxu0 0.0
      %963 = vmatprep.subr.mxu0 0.0
      %964 = vmatpush1.msra.mxu0 0.0
      %965 = vmatprep.subr.mxu0 0.0
      %966 = vmatpush1.msra.mxu0 0.0
      %967 = vmatprep.subr.mxu0 0.0
      %968 = vmatpush1.msra.mxu0 0.0
      %969 = vmatprep.subr.mxu0 0.0
      %970 = vmatpush1.msra.mxu0 0.0
      %971 = vmatprep.subr.mxu0 0.0
      %972 = vmatpush1.msra.mxu0 0.0
      %973 = vmatprep.subr.mxu0 0.0
      %974 = vmatpush1.msra.mxu0 0.0
      %975 = vmatprep.subr.mxu0 0.0
      %976 = vmatpush1.msra.mxu0 0.0
      %977 = vmatprep.mubr.f32.mxu0 0.0
      %978 = vmatmul.mubr.f32.gmra.mrb[0].mxu0 %v887
      %v979 = vpop.f32.mrb[0].mxu0
      %v980 = vadd.f32 0.0, %v979
      %v981 = vpop.f32.mrb[0].mxu0
      %982 = vmatprep.mubr.f32.mxu0 0.0
      %983 = vmatmul.mubr.f32.gmra.mrb[0].mxu0 %v890
      %v984 = vpop.f32.mrb[0].mxu0
      %v985 = vadd.f32 0.0, %v984
      %v986 = vpop.f32.mrb[0].mxu0
      %987 = vmatprep.mubr.f32.mxu0 0.0
      %988 = vmatmul.mubr.f32.gmra.mrb[0].mxu0 %v893
      %v989 = vpop.f32.mrb[0].mxu0
      %v990 = vadd.f32 0.0, %v989
      %v991 = vpop.f32.mrb[0].mxu0
      %992 = vmatprep.mubr.f32.mxu0 0.0
      %993 = vmatmul.mubr.f32.gmra.mrb[0].mxu0 %v896
      %v994 = vpop.f32.mrb[0].mxu0
      %v995 = vadd.f32 0.0, %v994
      %v996 = vpop.f32.mrb[0].mxu0
      %997 = vmatprep.mubr.f32.mxu0 0.0
      %998 = vmatmul.mubr.f32.gmra.mrb[0].mxu0 %v899
      %v999 = vpop.f32.mrb[0].mxu0
      %v1000 = vadd.f32 0.0, %v999
      %v1001 = vpop.f32.mrb[0].mxu0
      %1002 = vmatprep.mubr.f32.mxu0 0.0
      %1003 = vmatmul.mubr.f32.gmra.mrb[0].mxu0 %v902
      %v1004 = vpop.f32.mrb[0].mxu0
      %v1005 = vadd.f32 0.0, %v1004
      %v1006 = vpop.f32.mrb[0].mxu0
      %1007 = vmatprep.mubr.f32.mxu0 0.0
      %1008 = vmatmul.mubr.f32.gmra.mrb[0].mxu0 %v905
      %v1009 = vpop.f32.mrb[0].mxu0
      %v1010 = vadd.f32 0.0, %v1009
      %v1011 = vpop.f32.mrb[0].mxu0
      %1012 = vmatprep.mubr.f32.mxu0 0.0
      %1013 = vmatmul.mubr.f32.gmra.mrb[0].mxu0 %v908
      %v1014 = vpop.f32.mrb[0].mxu0
      %v1015 = vadd.f32 0.0, %v1014
      %v1016 = vpop.f32.mrb[0].mxu0
      %1017 = vdwg.mxu0
      %v1018 = vadd.f32 %v870, %v980
      %v1019 = vadd.f32 %v871, %v985
      %v1020 = vadd.f32 %v872, %v990
      %v1021 = vadd.f32 %v873, %v995
      %v1022 = vadd.f32 %v874, %v1000
      %v1023 = vadd.f32 %v875, %v1005
      %v1024 = vadd.f32 %v876, %v1010
      %v1025 = vadd.f32 %v877, %v1015
      %v1026 = vld [vmem:[#allocation4 + $0x1] sm:$0xff]
      %v1027 = vld [vmem:[#allocation4 + $0x11] sm:$0xff]
      %v1028 = vld [vmem:[#allocation4 + $0x21] sm:$0xff]
      %v1029 = vld [vmem:[#allocation4 + $0x31] sm:$0xff]
      %v1030 = vld [vmem:[#allocation4 + $0x41] sm:$0xff]
      %v1031 = vld [vmem:[#allocation4 + $0x51] sm:$0xff]
      %v1032 = vld [vmem:[#allocation4 + $0x61] sm:$0xff]
      %v1033 = vld [vmem:[#allocation4 + $0x71] sm:$0xff]
      %v1034 = vrot.slane %v297, 4
      %v1036 = vsel %vm212, %v1026, 0
      %v1039 = vsel %vm212, %v1027, 0
      %v1042 = vsel %vm212, %v1028, 0
      %v1045 = vsel %vm212, %v1029, 0
      %v1048 = vsel %vm212, %v1030, 0
      %v1051 = vsel %vm212, %v1031, 0
      %v1054 = vsel %vm212, %v1032, 0
      %v1057 = vsel %vm212, %v1033, 0
      %v1059 = vsel %vm343, %v1034, 0
      %1061 = vmatprep.subr.mxu0 0.0
      %1062 = vmatpush1.msra.mxu0 %v1059
      %1063 = vmatprep.subr.mxu0 0.0
      %1064 = vmatpush1.msra.mxu0 0.0
      %1065 = vmatprep.subr.mxu0 0.0
      %1066 = vmatpush1.msra.mxu0 0.0
      %1067 = vmatprep.subr.mxu0 0.0
      %1068 = vmatpush1.msra.mxu0 0.0
      %1069 = vmatprep.subr.mxu0 0.0
      %1070 = vmatpush1.msra.mxu0 0.0
      %1071 = vmatprep.subr.mxu0 0.0
      %1072 = vmatpush1.msra.mxu0 0.0
      %1073 = vmatprep.subr.mxu0 0.0
      %1074 = vmatpush1.msra.mxu0 0.0
      %1075 = vmatprep.subr.mxu0 0.0
      %1076 = vmatpush1.msra.mxu0 0.0
      %1077 = vmatprep.subr.mxu0 0.0
      %1078 = vmatpush1.msra.mxu0 0.0
      %1079 = vmatprep.subr.mxu0 0.0
      %1080 = vmatpush1.msra.mxu0 0.0
      %1081 = vmatprep.subr.mxu0 0.0
      %1082 = vmatpush1.msra.mxu0 0.0
      %1083 = vmatprep.subr.mxu0 0.0
      %1084 = vmatpush1.msra.mxu0 0.0
      %1085 = vmatprep.subr.mxu0 0.0
      %1086 = vmatpush1.msra.mxu0 0.0
      %1087 = vmatprep.subr.mxu0 0.0
      %1088 = vmatpush1.msra.mxu0 0.0
      %1089 = vmatprep.subr.mxu0 0.0
      %1090 = vmatpush1.msra.mxu0 0.0
      %1091 = vmatprep.subr.mxu0 0.0
      %1092 = vmatpush1.msra.mxu0 0.0
      %1093 = vmatprep.subr.mxu0 0.0
      %1094 = vmatpush1.msra.mxu0 0.0
      %1095 = vmatprep.subr.mxu0 0.0
      %1096 = vmatpush1.msra.mxu0 0.0
      %1097 = vmatprep.subr.mxu0 0.0
      %1098 = vmatpush1.msra.mxu0 0.0
      %1099 = vmatprep.subr.mxu0 0.0
      %1100 = vmatpush1.msra.mxu0 0.0
      %1101 = vmatprep.subr.mxu0 0.0
      %1102 = vmatpush1.msra.mxu0 0.0
      %1103 = vmatprep.subr.mxu0 0.0
      %1104 = vmatpush1.msra.mxu0 0.0
      %1105 = vmatprep.subr.mxu0 0.0
      %1106 = vmatpush1.msra.mxu0 0.0
      %1107 = vmatprep.subr.mxu0 0.0
      %1108 = vmatpush1.msra.mxu0 0.0
      %1109 = vmatprep.subr.mxu0 0.0
      %1110 = vmatpush1.msra.mxu0 0.0
      %1111 = vmatprep.subr.mxu0 0.0
      %1112 = vmatpush1.msra.mxu0 0.0
      %1113 = vmatprep.subr.mxu0 0.0
      %1114 = vmatpush1.msra.mxu0 0.0
      %1115 = vmatprep.subr.mxu0 0.0
      %1116 = vmatpush1.msra.mxu0 0.0
      %1117 = vmatprep.subr.mxu0 0.0
      %1118 = vmatpush1.msra.mxu0 0.0
      %1119 = vmatprep.subr.mxu0 0.0
      %1120 = vmatpush1.msra.mxu0 0.0
      %1121 = vmatprep.subr.mxu0 0.0
      %1122 = vmatpush1.msra.mxu0 0.0
      %1123 = vmatprep.subr.mxu0 0.0
      %1124 = vmatpush1.msra.mxu0 0.0
      %1125 = vmatprep.mubr.f32.mxu0 0.0
      %1126 = vmatmul.mubr.f32.gmra.mrb[0].mxu0 %v1036
      %v1127 = vpop.f32.mrb[0].mxu0
      %v1128 = vadd.f32 0.0, %v1127
      %v1129 = vpop.f32.mrb[0].mxu0
      %1130 = vmatprep.mubr.f32.mxu0 0.0
      %1131 = vmatmul.mubr.f32.gmra.mrb[0].mxu0 %v1039
      %v1132 = vpop.f32.mrb[0].mxu0
      %v1133 = vadd.f32 0.0, %v1132
      %v1134 = vpop.f32.mrb[0].mxu0
      %1135 = vmatprep.mubr.f32.mxu0 0.0
      %1136 = vmatmul.mubr.f32.gmra.mrb[0].mxu0 %v1042
      %v1137 = vpop.f32.mrb[0].mxu0
      %v1138 = vadd.f32 0.0, %v1137
      %v1139 = vpop.f32.mrb[0].mxu0
      %1140 = vmatprep.mubr.f32.mxu0 0.0
      %1141 = vmatmul.mubr.f32.gmra.mrb[0].mxu0 %v1045
      %v1142 = vpop.f32.mrb[0].mxu0
      %v1143 = vadd.f32 0.0, %v1142
      %v1144 = vpop.f32.mrb[0].mxu0
      %1145 = vmatprep.mubr.f32.mxu0 0.0
      %1146 = vmatmul.mubr.f32.gmra.mrb[0].mxu0 %v1048
      %v1147 = vpop.f32.mrb[0].mxu0
      %v1148 = vadd.f32 0.0, %v1147
      %v1149 = vpop.f32.mrb[0].mxu0
      %1150 = vmatprep.mubr.f32.mxu0 0.0
      %1151 = vmatmul.mubr.f32.gmra.mrb[0].mxu0 %v1051
      %v1152 = vpop.f32.mrb[0].mxu0
      %v1153 = vadd.f32 0.0, %v1152
      %v1154 = vpop.f32.mrb[0].mxu0
      %1155 = vmatprep.mubr.f32.mxu0 0.0
      %1156 = vmatmul.mubr.f32.gmra.mrb[0].mxu0 %v1054
      %v1157 = vpop.f32.mrb[0].mxu0
      %v1158 = vadd.f32 0.0, %v1157
      %v1159 = vpop.f32.mrb[0].mxu0
      %1160 = vmatprep.mubr.f32.mxu0 0.0
      %1161 = vmatmul.mubr.f32.gmra.mrb[0].mxu0 %v1057
      %v1162 = vpop.f32.mrb[0].mxu0
      %v1163 = vadd.f32 0.0, %v1162
      %v1164 = vpop.f32.mrb[0].mxu0
      %1165 = vdwg.mxu0
      %v1166 = vadd.f32 %v1018, %v1128
      %v1167 = vadd.f32 %v1019, %v1133
      %v1168 = vadd.f32 %v1020, %v1138
      %v1169 = vadd.f32 %v1021, %v1143
      %v1170 = vadd.f32 %v1022, %v1148
      %v1171 = vadd.f32 %v1023, %v1153
      %v1172 = vadd.f32 %v1024, %v1158
      %v1173 = vadd.f32 %v1025, %v1163
      %v1174 = vld [vmem:[%s286] sm:$0xff]
      %v1175 = vld [vmem:[%s286 + $0x10] sm:$0xff]
      %v1176 = vld [vmem:[%s286 + $0x20] sm:$0xff]
      %v1177 = vld [vmem:[%s286 + $0x30] sm:$0xff]
      %v1178 = vld [vmem:[%s286 + $0x40] sm:$0xff]
      %v1179 = vld [vmem:[%s286 + $0x50] sm:$0xff]
      %v1180 = vld [vmem:[%s286 + $0x60] sm:$0xff]
      %v1181 = vld [vmem:[%s286 + $0x70] sm:$0xff]
      %v1183 = vsel %vm212, %v1174, 0
      %v1186 = vsel %vm212, %v1175, 0
      %v1189 = vsel %vm212, %v1176, 0
      %v1192 = vsel %vm212, %v1177, 0
      %v1195 = vsel %vm212, %v1178, 0
      %v1198 = vsel %vm212, %v1179, 0
      %v1201 = vsel %vm212, %v1180, 0
      %v1204 = vsel %vm212, %v1181, 0
      %v1207 = vsel %vm343, %v298, 0
      %1209 = vmatprep.subr.mxu0 0.0
      %1210 = vmatpush1.msra.mxu0 %v1207
      %1211 = vmatprep.subr.mxu0 0.0
      %1212 = vmatpush1.msra.mxu0 0.0
      %1213 = vmatprep.subr.mxu0 0.0
      %1214 = vmatpush1.msra.mxu0 0.0
      %1215 = vmatprep.subr.mxu0 0.0
      %1216 = vmatpush1.msra.mxu0 0.0
      %1217 = vmatprep.subr.mxu0 0.0
      %1218 = vmatpush1.msra.mxu0 0.0
      %1219 = vmatprep.subr.mxu0 0.0
      %1220 = vmatpush1.msra.mxu0 0.0
      %1221 = vmatprep.subr.mxu0 0.0
      %1222 = vmatpush1.msra.mxu0 0.0
      %1223 = vmatprep.subr.mxu0 0.0
      %1224 = vmatpush1.msra.mxu0 0.0
      %1225 = vmatprep.subr.mxu0 0.0
      %1226 = vmatpush1.msra.mxu0 0.0
      %1227 = vmatprep.subr.mxu0 0.0
      %1228 = vmatpush1.msra.mxu0 0.0
      %1229 = vmatprep.subr.mxu0 0.0
      %1230 = vmatpush1.msra.mxu0 0.0
      %1231 = vmatprep.subr.mxu0 0.0
      %1232 = vmatpush1.msra.mxu0 0.0
      %1233 = vmatprep.subr.mxu0 0.0
      %1234 = vmatpush1.msra.mxu0 0.0
      %1235 = vmatprep.subr.mxu0 0.0
      %1236 = vmatpush1.msra.mxu0 0.0
      %1237 = vmatprep.subr.mxu0 0.0
      %1238 = vmatpush1.msra.mxu0 0.0
      %1239 = vmatprep.subr.mxu0 0.0
      %1240 = vmatpush1.msra.mxu0 0.0
      %1241 = vmatprep.subr.mxu0 0.0
      %1242 = vmatpush1.msra.mxu0 0.0
      %1243 = vmatprep.subr.mxu0 0.0
      %1244 = vmatpush1.msra.mxu0 0.0
      %1245 = vmatprep.subr.mxu0 0.0
      %1246 = vmatpush1.msra.mxu0 0.0
      %1247 = vmatprep.subr.mxu0 0.0
      %1248 = vmatpush1.msra.mxu0 0.0
      %1249 = vmatprep.subr.mxu0 0.0
      %1250 = vmatpush1.msra.mxu0 0.0
      %1251 = vmatprep.subr.mxu0 0.0
      %1252 = vmatpush1.msra.mxu0 0.0
      %1253 = vmatprep.subr.mxu0 0.0
      %1254 = vmatpush1.msra.mxu0 0.0
      %1255 = vmatprep.subr.mxu0 0.0
      %1256 = vmatpush1.msra.mxu0 0.0
      %1257 = vmatprep.subr.mxu0 0.0
      %1258 = vmatpush1.msra.mxu0 0.0
      %1259 = vmatprep.subr.mxu0 0.0
      %1260 = vmatpush1.msra.mxu0 0.0
      %1261 = vmatprep.subr.mxu0 0.0
      %1262 = vmatpush1.msra.mxu0 0.0
      %1263 = vmatprep.subr.mxu0 0.0
      %1264 = vmatpush1.msra.mxu0 0.0
      %1265 = vmatprep.subr.mxu0 0.0
      %1266 = vmatpush1.msra.mxu0 0.0
      %1267 = vmatprep.subr.mxu0 0.0
      %1268 = vmatpush1.msra.mxu0 0.0
      %1269 = vmatprep.subr.mxu0 0.0
      %1270 = vmatpush1.msra.mxu0 0.0
      %1271 = vmatprep.subr.mxu0 0.0
      %1272 = vmatpush1.msra.mxu0 0.0
      %1273 = vmatprep.mubr.f32.mxu0 0.0
      %1274 = vmatmul.mubr.f32.gmra.mrb[0].mxu0 %v1183
      %v1275 = vpop.f32.mrb[0].mxu0
      %v1276 = vadd.f32 0.0, %v1275
      %v1277 = vpop.f32.mrb[0].mxu0
      %1278 = vmatprep.mubr.f32.mxu0 0.0
      %1279 = vmatmul.mubr.f32.gmra.mrb[0].mxu0 %v1186
      %v1280 = vpop.f32.mrb[0].mxu0
      %v1281 = vadd.f32 0.0, %v1280
      %v1282 = vpop.f32.mrb[0].mxu0
      %1283 = vmatprep.mubr.f32.mxu0 0.0
      %1284 = vmatmul.mubr.f32.gmra.mrb[0].mxu0 %v1189
      %v1285 = vpop.f32.mrb[0].mxu0
      %v1286 = vadd.f32 0.0, %v1285
      %v1287 = vpop.f32.mrb[0].mxu0
      %1288 = vmatprep.mubr.f32.mxu0 0.0
      %1289 = vmatmul.mubr.f32.gmra.mrb[0].mxu0 %v1192
      %v1290 = vpop.f32.mrb[0].mxu0
      %v1291 = vadd.f32 0.0, %v1290
      %v1292 = vpop.f32.mrb[0].mxu0
      %1293 = vmatprep.mubr.f32.mxu0 0.0
      %1294 = vmatmul.mubr.f32.gmra.mrb[0].mxu0 %v1195
      %v1295 = vpop.f32.mrb[0].mxu0
      %v1296 = vadd.f32 0.0, %v1295
      %v1297 = vpop.f32.mrb[0].mxu0
      %1298 = vmatprep.mubr.f32.mxu0 0.0
      %1299 = vmatmul.mubr.f32.gmra.mrb[0].mxu0 %v1198
      %v1300 = vpop.f32.mrb[0].mxu0
      %v1301 = vadd.f32 0.0, %v1300
      %v1302 = vpop.f32.mrb[0].mxu0
      %1303 = vmatprep.mubr.f32.mxu0 0.0
      %1304 = vmatmul.mubr.f32.gmra.mrb[0].mxu0 %v1201
      %v1305 = vpop.f32.mrb[0].mxu0
      %v1306 = vadd.f32 0.0, %v1305
      %v1307 = vpop.f32.mrb[0].mxu0
      %1308 = vmatprep.mubr.f32.mxu0 0.0
      %1309 = vmatmul.mubr.f32.gmra.mrb[0].mxu0 %v1204
      %v1310 = vpop.f32.mrb[0].mxu0
      %v1311 = vadd.f32 0.0, %v1310
      %v1312 = vpop.f32.mrb[0].mxu0
      %1313 = vdwg.mxu0
      %v1314 = vadd.f32 %v1166, %v1276
      %v1315 = vadd.f32 %v1167, %v1281
      %v1316 = vadd.f32 %v1168, %v1286
      %v1317 = vadd.f32 %v1169, %v1291
      %v1318 = vadd.f32 %v1170, %v1296
      %v1319 = vadd.f32 %v1171, %v1301
      %v1320 = vadd.f32 %v1172, %v1306
      %v1321 = vadd.f32 %v1173, %v1311
      %v1322 = vld [vmem:[%s261] sm:$0xff]
      %v1323 = vld [vmem:[%s261 + $0x8] sm:$0xff]
      %v1324 = vld [vmem:[%s261 + $0x10] sm:$0xff]
      %v1325 = vld [vmem:[%s261 + $0x18] sm:$0xff]
      %v1326 = vld [vmem:[%s261 + $0x20] sm:$0xff]
      %v1327 = vld [vmem:[%s261 + $0x28] sm:$0xff]
      %v1328 = vld [vmem:[%s261 + $0x30] sm:$0xff]
      %v1329 = vld [vmem:[%s261 + $0x38] sm:$0xff]
      %v1330 = vrot.slane %v298, 4
      %v1332 = vsel %vm212, %v1322, 0
      %v1335 = vsel %vm212, %v1323, 0
      %v1338 = vsel %vm212, %v1324, 0
      %v1341 = vsel %vm212, %v1325, 0
      %v1344 = vsel %vm212, %v1326, 0
      %v1347 = vsel %vm212, %v1327, 0
      %v1350 = vsel %vm212, %v1328, 0
      %v1353 = vsel %vm212, %v1329, 0
      %v1355 = vsel %vm343, %v1330, 0
      %1357 = vmatprep.subr.mxu0 0.0
      %1358 = vmatpush1.msra.mxu0 %v1355
      %1359 = vmatprep.subr.mxu0 0.0
      %1360 = vmatpush1.msra.mxu0 0.0
      %1361 = vmatprep.subr.mxu0 0.0
      %1362 = vmatpush1.msra.mxu0 0.0
      %1363 = vmatprep.subr.mxu0 0.0
      %1364 = vmatpush1.msra.mxu0 0.0
      %1365 = vmatprep.subr.mxu0 0.0
      %1366 = vmatpush1.msra.mxu0 0.0
      %1367 = vmatprep.subr.mxu0 0.0
      %1368 = vmatpush1.msra.mxu0 0.0
      %1369 = vmatprep.subr.mxu0 0.0
      %1370 = vmatpush1.msra.mxu0 0.0
      %1371 = vmatprep.subr.mxu0 0.0
      %1372 = vmatpush1.msra.mxu0 0.0
      %1373 = vmatprep.subr.mxu0 0.0
      %1374 = vmatpush1.msra.mxu0 0.0
      %1375 = vmatprep.subr.mxu0 0.0
      %1376 = vmatpush1.msra.mxu0 0.0
      %1377 = vmatprep.subr.mxu0 0.0
      %1378 = vmatpush1.msra.mxu0 0.0
      %1379 = vmatprep.subr.mxu0 0.0
      %1380 = vmatpush1.msra.mxu0 0.0
      %1381 = vmatprep.subr.mxu0 0.0
      %1382 = vmatpush1.msra.mxu0 0.0
      %1383 = vmatprep.subr.mxu0 0.0
      %1384 = vmatpush1.msra.mxu0 0.0
      %1385 = vmatprep.subr.mxu0 0.0
      %1386 = vmatpush1.msra.mxu0 0.0
      %1387 = vmatprep.subr.mxu0 0.0
      %1388 = vmatpush1.msra.mxu0 0.0
      %1389 = vmatprep.subr.mxu0 0.0
      %1390 = vmatpush1.msra.mxu0 0.0
      %1391 = vmatprep.subr.mxu0 0.0
      %1392 = vmatpush1.msra.mxu0 0.0
      %1393 = vmatprep.subr.mxu0 0.0
      %1394 = vmatpush1.msra.mxu0 0.0
      %1395 = vmatprep.subr.mxu0 0.0
      %1396 = vmatpush1.msra.mxu0 0.0
      %1397 = vmatprep.subr.mxu0 0.0
      %1398 = vmatpush1.msra.mxu0 0.0
      %1399 = vmatprep.subr.mxu0 0.0
      %1400 = vmatpush1.msra.mxu0 0.0
      %1401 = vmatprep.subr.mxu0 0.0
      %1402 = vmatpush1.msra.mxu0 0.0
      %1403 = vmatprep.subr.mxu0 0.0
      %1404 = vmatpush1.msra.mxu0 0.0
      %1405 = vmatprep.subr.mxu0 0.0
      %1406 = vmatpush1.msra.mxu0 0.0
      %1407 = vmatprep.subr.mxu0 0.0
      %1408 = vmatpush1.msra.mxu0 0.0
      %1409 = vmatprep.subr.mxu0 0.0
      %1410 = vmatpush1.msra.mxu0 0.0
      %1411 = vmatprep.subr.mxu0 0.0
      %1412 = vmatpush1.msra.mxu0 0.0
      %1413 = vmatprep.subr.mxu0 0.0
      %1414 = vmatpush1.msra.mxu0 0.0
      %1415 = vmatprep.subr.mxu0 0.0
      %1416 = vmatpush1.msra.mxu0 0.0
      %1417 = vmatprep.subr.mxu0 0.0
      %1418 = vmatpush1.msra.mxu0 0.0
      %1419 = vmatprep.subr.mxu0 0.0
      %1420 = vmatpush1.msra.mxu0 0.0
      %1421 = vmatprep.mubr.f32.mxu0 0.0
      %1422 = vmatmul.mubr.f32.gmra.mrb[0].mxu0 %v1332
      %v1423 = vpop.f32.mrb[0].mxu0
      %v1424 = vadd.f32 0.0, %v1423
      %v1425 = vpop.f32.mrb[0].mxu0
      %1426 = vmatprep.mubr.f32.mxu0 0.0
      %1427 = vmatmul.mubr.f32.gmra.mrb[0].mxu0 %v1335
      %v1428 = vpop.f32.mrb[0].mxu0
      %v1429 = vadd.f32 0.0, %v1428
      %v1430 = vpop.f32.mrb[0].mxu0
      %1431 = vmatprep.mubr.f32.mxu0 0.0
      %1432 = vmatmul.mubr.f32.gmra.mrb[0].mxu0 %v1338
      %v1433 = vpop.f32.mrb[0].mxu0
      %v1434 = vadd.f32 0.0, %v1433
      %v1435 = vpop.f32.mrb[0].mxu0
      %1436 = vmatprep.mubr.f32.mxu0 0.0
      %1437 = vmatmul.mubr.f32.gmra.mrb[0].mxu0 %v1341
      %v1438 = vpop.f32.mrb[0].mxu0
      %v1439 = vadd.f32 0.0, %v1438
      %v1440 = vpop.f32.mrb[0].mxu0
      %1441 = vmatprep.mubr.f32.mxu0 0.0
      %1442 = vmatmul.mubr.f32.gmra.mrb[0].mxu0 %v1344
      %v1443 = vpop.f32.mrb[0].mxu0
      %v1444 = vadd.f32 0.0, %v1443
      %v1445 = vpop.f32.mrb[0].mxu0
      %1446 = vmatprep.mubr.f32.mxu0 0.0
      %1447 = vmatmul.mubr.f32.gmra.mrb[0].mxu0 %v1347
      %v1448 = vpop.f32.mrb[0].mxu0
      %v1449 = vadd.f32 0.0, %v1448
      %v1450 = vpop.f32.mrb[0].mxu0
      %1451 = vmatprep.mubr.f32.mxu0 0.0
      %1452 = vmatmul.mubr.f32.gmra.mrb[0].mxu0 %v1350
      %v1453 = vpop.f32.mrb[0].mxu0
      %v1454 = vadd.f32 0.0, %v1453
      %v1455 = vpop.f32.mrb[0].mxu0
      %1456 = vmatprep.mubr.f32.mxu0 0.0
      %1457 = vmatmul.mubr.f32.gmra.mrb[0].mxu0 %v1353
      %v1458 = vpop.f32.mrb[0].mxu0
      %v1459 = vadd.f32 0.0, %v1458
      %v1460 = vpop.f32.mrb[0].mxu0
      %1461 = vdwg.mxu0
      %v1462 = vadd.f32 %v1314, %v1424
      %v1463 = vadd.f32 %v1315, %v1429
      %v1464 = vadd.f32 %v1316, %v1434
      %v1465 = vadd.f32 %v1317, %v1439
      %v1466 = vadd.f32 %v1318, %v1444
      %v1467 = vadd.f32 %v1319, %v1449
      %v1468 = vadd.f32 %v1320, %v1454
      %v1469 = vadd.f32 %v1321, %v1459
      %v1470 = vld [vmem:[%s286 + $0x1] sm:$0xff]
      %v1471 = vld [vmem:[%s286 + $0x11] sm:$0xff]
      %v1472 = vld [vmem:[%s286 + $0x21] sm:$0xff]
      %v1473 = vld [vmem:[%s286 + $0x31] sm:$0xff]
      %v1474 = vld [vmem:[%s286 + $0x41] sm:$0xff]
      %v1475 = vld [vmem:[%s286 + $0x51] sm:$0xff]
      %v1476 = vld [vmem:[%s286 + $0x61] sm:$0xff]
      %v1477 = vld [vmem:[%s286 + $0x71] sm:$0xff]
      %v1479 = vsel %vm212, %v1470, 0
      %v1482 = vsel %vm212, %v1471, 0
      %v1485 = vsel %vm212, %v1472, 0
      %v1488 = vsel %vm212, %v1473, 0
      %v1491 = vsel %vm212, %v1474, 0
      %v1494 = vsel %vm212, %v1475, 0
      %v1497 = vsel %vm212, %v1476, 0
      %v1500 = vsel %vm212, %v1477, 0
      %v1503 = vsel %vm343, %v299, 0
      %1505 = vmatprep.subr.mxu0 0.0
      %1506 = vmatpush1.msra.mxu0 %v1503
      %1507 = vmatprep.subr.mxu0 0.0
      %1508 = vmatpush1.msra.mxu0 0.0
      %1509 = vmatprep.subr.mxu0 0.0
      %1510 = vmatpush1.msra.mxu0 0.0
      %1511 = vmatprep.subr.mxu0 0.0
      %1512 = vmatpush1.msra.mxu0 0.0
      %1513 = vmatprep.subr.mxu0 0.0
      %1514 = vmatpush1.msra.mxu0 0.0
      %1515 = vmatprep.subr.mxu0 0.0
      %1516 = vmatpush1.msra.mxu0 0.0
      %1517 = vmatprep.subr.mxu0 0.0
      %1518 = vmatpush1.msra.mxu0 0.0
      %1519 = vmatprep.subr.mxu0 0.0
      %1520 = vmatpush1.msra.mxu0 0.0
      %1521 = vmatprep.subr.mxu0 0.0
      %1522 = vmatpush1.msra.mxu0 0.0
      %1523 = vmatprep.subr.mxu0 0.0
      %1524 = vmatpush1.msra.mxu0 0.0
      %1525 = vmatprep.subr.mxu0 0.0
      %1526 = vmatpush1.msra.mxu0 0.0
      %1527 = vmatprep.subr.mxu0 0.0
      %1528 = vmatpush1.msra.mxu0 0.0
      %1529 = vmatprep.subr.mxu0 0.0
      %1530 = vmatpush1.msra.mxu0 0.0
      %1531 = vmatprep.subr.mxu0 0.0
      %1532 = vmatpush1.msra.mxu0 0.0
      %1533 = vmatprep.subr.mxu0 0.0
      %1534 = vmatpush1.msra.mxu0 0.0
      %1535 = vmatprep.subr.mxu0 0.0
      %1536 = vmatpush1.msra.mxu0 0.0
      %1537 = vmatprep.subr.mxu0 0.0
      %1538 = vmatpush1.msra.mxu0 0.0
      %1539 = vmatprep.subr.mxu0 0.0
      %1540 = vmatpush1.msra.mxu0 0.0
      %1541 = vmatprep.subr.mxu0 0.0
      %1542 = vmatpush1.msra.mxu0 0.0
      %1543 = vmatprep.subr.mxu0 0.0
      %1544 = vmatpush1.msra.mxu0 0.0
      %1545 = vmatprep.subr.mxu0 0.0
      %1546 = vmatpush1.msra.mxu0 0.0
      %1547 = vmatprep.subr.mxu0 0.0
      %1548 = vmatpush1.msra.mxu0 0.0
      %1549 = vmatprep.subr.mxu0 0.0
      %1550 = vmatpush1.msra.mxu0 0.0
      %1551 = vmatprep.subr.mxu0 0.0
      %1552 = vmatpush1.msra.mxu0 0.0
      %1553 = vmatprep.subr.mxu0 0.0
      %1554 = vmatpush1.msra.mxu0 0.0
      %1555 = vmatprep.subr.mxu0 0.0
      %1556 = vmatpush1.msra.mxu0 0.0
      %1557 = vmatprep.subr.mxu0 0.0
      %1558 = vmatpush1.msra.mxu0 0.0
      %1559 = vmatprep.subr.mxu0 0.0
      %1560 = vmatpush1.msra.mxu0 0.0
      %1561 = vmatprep.subr.mxu0 0.0
      %1562 = vmatpush1.msra.mxu0 0.0
      %1563 = vmatprep.subr.mxu0 0.0
      %1564 = vmatpush1.msra.mxu0 0.0
      %1565 = vmatprep.subr.mxu0 0.0
      %1566 = vmatpush1.msra.mxu0 0.0
      %1567 = vmatprep.subr.mxu0 0.0
      %1568 = vmatpush1.msra.mxu0 0.0
      %1569 = vmatprep.mubr.f32.mxu0 0.0
      %1570 = vmatmul.mubr.f32.gmra.mrb[0].mxu0 %v1479
      %v1571 = vpop.f32.mrb[0].mxu0
      %v1572 = vadd.f32 0.0, %v1571
      %v1573 = vpop.f32.mrb[0].mxu0
      %1574 = vmatprep.mubr.f32.mxu0 0.0
      %1575 = vmatmul.mubr.f32.gmra.mrb[0].mxu0 %v1482
      %v1576 = vpop.f32.mrb[0].mxu0
      %v1577 = vadd.f32 0.0, %v1576
      %v1578 = vpop.f32.mrb[0].mxu0
      %1579 = vmatprep.mubr.f32.mxu0 0.0
      %1580 = vmatmul.mubr.f32.gmra.mrb[0].mxu0 %v1485
      %v1581 = vpop.f32.mrb[0].mxu0
      %v1582 = vadd.f32 0.0, %v1581
      %v1583 = vpop.f32.mrb[0].mxu0
      %1584 = vmatprep.mubr.f32.mxu0 0.0
      %1585 = vmatmul.mubr.f32.gmra.mrb[0].mxu0 %v1488
      %v1586 = vpop.f32.mrb[0].mxu0
      %v1587 = vadd.f32 0.0, %v1586
      %v1588 = vpop.f32.mrb[0].mxu0
      %1589 = vmatprep.mubr.f32.mxu0 0.0
      %1590 = vmatmul.mubr.f32.gmra.mrb[0].mxu0 %v1491
      %v1591 = vpop.f32.mrb[0].mxu0
      %v1592 = vadd.f32 0.0, %v1591
      %v1593 = vpop.f32.mrb[0].mxu0
      %1594 = vmatprep.mubr.f32.mxu0 0.0
      %1595 = vmatmul.mubr.f32.gmra.mrb[0].mxu0 %v1494
      %v1596 = vpop.f32.mrb[0].mxu0
      %v1597 = vadd.f32 0.0, %v1596
      %v1598 = vpop.f32.mrb[0].mxu0
      %1599 = vmatprep.mubr.f32.mxu0 0.0
      %1600 = vmatmul.mubr.f32.gmra.mrb[0].mxu0 %v1497
      %v1601 = vpop.f32.mrb[0].mxu0
      %v1602 = vadd.f32 0.0, %v1601
      %v1603 = vpop.f32.mrb[0].mxu0
      %1604 = vmatprep.mubr.f32.mxu0 0.0
      %1605 = vmatmul.mubr.f32.gmra.mrb[0].mxu0 %v1500
      %v1606 = vpop.f32.mrb[0].mxu0
      %v1607 = vadd.f32 0.0, %v1606
      %v1608 = vpop.f32.mrb[0].mxu0
      %1609 = vdwg.mxu0
      %v1610 = vadd.f32 %v1462, %v1572
      %v1611 = vadd.f32 %v1463, %v1577
      %v1612 = vadd.f32 %v1464, %v1582
      %v1613 = vadd.f32 %v1465, %v1587
      %v1614 = vadd.f32 %v1466, %v1592
      %v1615 = vadd.f32 %v1467, %v1597
      %v1616 = vadd.f32 %v1468, %v1602
      %v1617 = vadd.f32 %v1469, %v1607
      %v1619 = vlaneseq
      %v1620 = vshrl.u32 %v1619, 7
      %v1621 = vsub.s32 0, %v1620
      %v1622 = vrot.slane %v300, %v1621
      %v1624 = vadd.f32 %v1610, %v1622
      %v1625 = vadd.f32 %v1611, %v1622
      %v1626 = vadd.f32 %v1612, %v1622
      %v1627 = vadd.f32 %v1613, %v1622
      %v1628 = vadd.f32 %v1614, %v1622
      %v1629 = vadd.f32 %v1615, %v1622
      %v1630 = vadd.f32 %v1616, %v1622
      %v1631 = vadd.f32 %v1617, %v1622
      %1632 = vst.msk [vmem:[%s170] sm:$0xff] %vm212, %v1624
      %1633 = vst.msk [vmem:[%s170 + $0x8] sm:$0xff] %vm212, %v1625
      %1634 = vst.msk [vmem:[%s170 + $0x10] sm:$0xff] %vm212, %v1626
      %1635 = vst.msk [vmem:[%s170 + $0x18] sm:$0xff] %vm212, %v1627
      %1636 = vst.msk [vmem:[%s170 + $0x20] sm:$0xff] %vm212, %v1628
      %1637 = vst.msk [vmem:[%s170 + $0x28] sm:$0xff] %vm212, %v1629
      %1638 = vst.msk [vmem:[%s170 + $0x30] sm:$0xff] %vm212, %v1630
      %1639 = vst.msk [vmem:[%s170 + $0x38] sm:$0xff] %vm212, %v1631
      %p1640 = scmp.lt.s32.totalorder %s14, 1
      %s1641 = scalar_select %p1640, %s14, 1
      %s1642 = smul.addr %s1641, 8
      %s1643 = smul.addr %s1642, 8
      %s1644 = scalar_lea.vmem %s3, %s1643
      // Predicated region
      $region37: #{downsample_conv.1} parent=31 // pred_check
        %p1645 = pneg %p100
      $region38: #{downsample_conv.1} parent=31 // pred_check_branch
        %1647 = sbr.rel (%p1645) target = $region40
      $region39: #{downsample_conv.1} parent=31 // pred_region
        _
      $region40: #{downsample_conv.1} parent=31 // pred_fallthru
        _
    $region32: #{downsample_conv.1} parent=5 // pred_fallthru
      _
    %p1648 = scmp.le.s32.totalorder 2, %s9
    // Predicated region
    $region41: #{downsample_conv.1} parent=5 // pred_check
      %p1649 = pneg %p1648
    $region42: #{downsample_conv.1} parent=5 // pred_check_branch
      %1651 = sbr.rel (%p1649) target = $region44
    $region43: #{downsample_conv.1} parent=5 // pred_region
      %s1652 = ssub.s32 %s9, 2
      // Predicated region
      $region45: #{downsample_conv.1} parent=43 // pred_check
        %p1653 = pneg %p106
      $region46: #{downsample_conv.1} parent=43 // pred_check_branch
        %1655 = sbr.rel (%p1653) target = $region48
      $region47: #{downsample_conv.1} parent=43 // pred_region
        %p1656 = scmp.lt.s32.totalorder %s15, 1
        %s1657 = scalar_select %p1656, %s15, 1
        %s1658 = smul.addr %s1657, 8
        %s1659 = smul.addr %s1658, 8
        %s1660 = scalar_lea.vmem %s3, %s1659
      $region48: #{downsample_conv.1} parent=43 // pred_fallthru
        _
    $region44: #{downsample_conv.1} parent=5 // pred_fallthru
      _
  $region6: #{downsample_conv.1} parent=0 // loop_footer
    %s13 = sadd.s32 1, %s9
  $region7: #{downsample_conv.1} parent=0 // loop_footer_branch
    %8 = sbr.rel target = $region3
  $region8: #{downsample_conv.1} parent=0 // loop_exit
    _

</llo_original>
